<compile_context>
chip_gen: v7x
topology: tpu7x:2x2x1
jax: 0.10.0
libtpu: 0.0.40
codegen_flags: <defaults>
</compile_context>

<pallas_src>
import jax
import jax.numpy as jnp
from jax.experimental import pallas as pl
from jax.experimental.pallas import tpu as pltpu

EPS = 1e-5
NEG_SLOPE = 0.01  # nn.LeakyReLU default


def _make_kernel(N, C, H, W):
    R = N * (H + 2)          # per-image padded rows, flattened
    R4 = R + 4               # + 2 global zero rows top & bottom
    L = (W + 2) * C          # lane axis: (padded width) x channels
    inv_m = 1.0 / float(N * H * W)

    def kernel(x_ref, mask_ref, a_ref, g1_ref, b1_ref, bw1_ref,
               g2_ref, b2_ref, bw2_ref, o_ref):
        # x_ref, mask_ref : (R4, L) f32   zero-padded input slab / interior mask
        # a_ref           : (L, L)  f32   same-channel indicator (channel fold)
        # gX/bX           : (1, L)  f32   BN gamma/beta tiled per lane
        # bwX_ref         : (3, L, L) f32 banded conv weights per row-offset dy
        # o_ref           : (R, L)  f32   conv2 output + residual (interior rows)
        A = a_ref[...]
        m_a = mask_ref[...]
        m_b = m_a[1:R4 - 1, :]

        def bn_lrelu(h, g, b, m):
            # Zero non-interior entries so single-pass sums are exact.
            h = h * m
            # Per-channel sums broadcast back per lane via one MXU matmul,
            # then a sublane reduce. Single pass: sum(x) and sum(x^2).
            cs1 = jnp.sum(jnp.dot(h, A, preferred_element_type=jnp.float32),
                          axis=0, keepdims=True)
            cs2 = jnp.sum(jnp.dot(h * h, A, preferred_element_type=jnp.float32),
                          axis=0, keepdims=True)
            mu = cs1 * inv_m
            var = cs2 * inv_m - mu * mu          # biased variance (training BN)
            scale = g * jax.lax.rsqrt(var + EPS)
            shift = b - mu * scale
            y = h * scale + shift
            y = jnp.where(y >= 0.0, y, NEG_SLOPE * y)
            return y * m                          # re-zero the padding ring

        def conv3x3(y, bw_ref):
            # out[r] = y[r-1] @ B[-1] + y[r] @ B[0] + y[r+1] @ B[+1]
            # B[dy] is a banded (L, L) matrix that folds the kx taps and the
            # Cin->Cout mixing into a single lane-dense MXU contraction.
            rows = y.shape[0]
            return (jnp.dot(y[0:rows - 2, :], bw_ref[0],
                            preferred_element_type=jnp.float32)
                    + jnp.dot(y[1:rows - 1, :], bw_ref[1],
                              preferred_element_type=jnp.float32)
                    + jnp.dot(y[2:rows, :], bw_ref[2],
                              preferred_element_type=jnp.float32))

        x = x_ref[...]                                        # (R4, L)
        y1 = bn_lrelu(x, g1_ref[...], b1_ref[...], m_a)        # (R4, L)
        h1 = conv3x3(y1, bw1_ref)                              # (R4-2, L)
        y2 = bn_lrelu(h1, g2_ref[...], b2_ref[...], m_b)       # (R4-2, L)
        h2 = conv3x3(y2, bw2_ref)                              # (R, L)
        o_ref[...] = h2 + x[2:R4 - 2, :]                       # residual

    return kernel


def residual_conv_block(x_nchw, g1, b1, w1_oihw, g2, b2, w2_oihw):
    """x_nchw: (N, C, H, W) float32; returns (N, C, H, W) float32."""
    N, C, H, W = x_nchw.shape
    f32 = jnp.float32
    L = (W + 2) * C
    R = N * (H + 2)

    # ---- wrapper-side layout plumbing (free XLA work) -----------------------
    x = jnp.transpose(x_nchw.astype(f32), (0, 2, 3, 1))                  # NHWC
    xp = jnp.pad(x, ((0, 0), (1, 1), (1, 1), (0, 0)))                    # pad H,W
    x_slab = jnp.pad(xp.reshape(R, L), ((2, 2), (0, 0)))                 # (R4, L)

    mask = jnp.pad(jnp.ones((N, H, W, C), f32),
                   ((0, 0), (1, 1), (1, 1), (0, 0)))
    mask_slab = jnp.pad(mask.reshape(R, L), ((2, 2), (0, 0)))            # (R4, L)

    # Same-channel indicator: A[w*C+ci, v*C+co] = (ci == co)
    A = jnp.kron(jnp.ones((W + 2, W + 2), f32), jnp.eye(C, dtype=f32))   # (L, L)

    # Banded conv-weight slabs: B_dy[(w+dx)*C+ci, w*C+co] = W[dy+1, dx+1, ci, co]
    col_keep = jnp.zeros((W + 2,), f32).at[1:W + 1].set(1.0)

    def band_weights(w_oihw):
        w_hwio = jnp.transpose(w_oihw.astype(f32), (2, 3, 1, 0))         # kh,kw,ci,co
        mats = []
        for dy in (-1, 0, 1):
            b = jnp.zeros((L, L), f32)
            for dx in (-1, 0, 1):
                D = jnp.eye(W + 2, k=-dx, dtype=f32) * col_keep[None, :]
                b = b + jnp.kron(D, w_hwio[dy + 1, dx + 1])
            mats.append(b)
        return jnp.stack(mats, axis=0)                                   # (3, L, L)

    B1 = band_weights(w1_oihw)
    B2 = band_weights(w2_oihw)

    # BN affine params tiled to the lane layout (lane = w*C + c).
    g1t = jnp.tile(g1.astype(f32).reshape(1, C), (1, W + 2))
    b1t = jnp.tile(b1.astype(f32).reshape(1, C), (1, W + 2))
    g2t = jnp.tile(g2.astype(f32).reshape(1, C), (1, W + 2))
    b2t = jnp.tile(b2.astype(f32).reshape(1, C), (1, W + 2))

    out_slab = pl.pallas_call(
        _make_kernel(N, C, H, W),
        out_shape=jax.ShapeDtypeStruct((R, L), f32),
        in_specs=[pl.BlockSpec(memory_space=pltpu.MemorySpace.VMEM)] * 9,
        out_specs=pl.BlockSpec(memory_space=pltpu.MemorySpace.VMEM),
        compiler_params=pltpu.CompilerParams(vmem_limit_bytes=32 * 1024 * 1024),
    )(x_slab, mask_slab, A, g1t, b1t, B1, g2t, b2t, B2)

    out = out_slab.reshape(N, H + 2, W + 2, C)[:, 1:H + 1, 1:W + 1, :]   # NHWC
    return jnp.transpose(out, (0, 3, 1, 2))                              # NCHW


def _reference(x_nchw, g1, b1, w1_oihw, g2, b2, w2_oihw):
    """Pure-JAX reference mirroring the PyTorch module (training-mode BN)."""
    def bn_lrelu(x, g, b):
        mu = jnp.mean(x, axis=(0, 2, 3), keepdims=True)
        var = jnp.mean((x - mu) ** 2, axis=(0, 2, 3), keepdims=True)
        h = (x - mu) * jax.lax.rsqrt(var + EPS)
        h = h * g.reshape(1, -1, 1, 1) + b.reshape(1, -1, 1, 1)
        return jnp.where(h >= 0.0, h, NEG_SLOPE * h)

    def conv(x, w):
        return jax.lax.conv_general_dilated(
            x, w, window_strides=(1, 1), padding=((1, 1), (1, 1)),
            dimension_numbers=("NCHW", "OIHW", "NCHW"))

    h = conv(bn_lrelu(x_nchw, g1, b1), w1_oihw)
    h = conv(bn_lrelu(h, g2, b2), w2_oihw)
    return h + x_nchw


if __name__ == "__main__":
    N, C, H, W = 2, 4, 16, 16
    key = jax.random.PRNGKey(0)
    kx, kw1, kw2 = jax.random.split(key, 3)

    x = jax.random.normal(kx, (N, C, H, W), dtype=jnp.float32)

    # Conv weights: kaiming_normal_ (fan_in = C*3*3, gain = sqrt(2)).
    fan_in = C * 3 * 3
    std = (2.0 / fan_in) ** 0.5
    w1 = std * jax.random.normal(kw1, (C, C, 3, 3), dtype=jnp.float32)  # OIHW
    w2 = std * jax.random.normal(kw2, (C, C, 3, 3), dtype=jnp.float32)  # OIHW

    # BatchNorm affine params (PyTorch defaults).
    g1 = jnp.ones((C,), jnp.float32)
    b1 = jnp.zeros((C,), jnp.float32)
    g2 = jnp.ones((C,), jnp.float32)
    b2 = jnp.zeros((C,), jnp.float32)

    out = residual_conv_block(x, g1, b1, w1, g2, b2, w2)
    out = jax.block_until_ready(out)

    ref = _reference(x, g1, b1, w1, g2, b2, w2)
    assert out.shape == (N, C, H, W)
    assert jnp.allclose(out, ref, atol=1e-4, rtol=1e-4), (
        f"max abs err = {jnp.max(jnp.abs(out - ref))}")

    print("KERNEL_OK")
</pallas_src>

<mosaic_0001>
module attributes {stable_mosaic.version = 11 : i64} {
  func.func @kernel(%arg0: memref<40x72xf32, #tpu.memory_space<vmem>>, %arg1: memref<40x72xf32, #tpu.memory_space<vmem>>, %arg2: memref<72x72xf32, #tpu.memory_space<vmem>>, %arg3: memref<1x72xf32, #tpu.memory_space<vmem>>, %arg4: memref<1x72xf32, #tpu.memory_space<vmem>>, %arg5: memref<3x72x72xf32, #tpu.memory_space<vmem>>, %arg6: memref<1x72xf32, #tpu.memory_space<vmem>>, %arg7: memref<1x72xf32, #tpu.memory_space<vmem>>, %arg8: memref<3x72x72xf32, #tpu.memory_space<vmem>>, %arg9: memref<36x72xf32, #tpu.memory_space<vmem>>) attributes {dimension_semantics = [], scalar_prefetch = 0 : i64, scratch_operands = 0 : i64, tpu.core_type = #tpu.core_type<tc>} {
    %c0 = arith.constant 0 : index
    %c0_0 = arith.constant 0 : index
    %0 = vector.load %arg2[%c0, %c0_0] : memref<72x72xf32, #tpu.memory_space<vmem>>, vector<72x72xf32>
    %c0_1 = arith.constant 0 : index
    %c0_2 = arith.constant 0 : index
    %1 = vector.load %arg1[%c0_1, %c0_2] : memref<40x72xf32, #tpu.memory_space<vmem>>, vector<40x72xf32>
    %2 = vector.extract_strided_slice %1 {offsets = [1, 0], sizes = [38, 72], strides = [1, 1]} : vector<40x72xf32> to vector<38x72xf32>
    %c0_3 = arith.constant 0 : index
    %c0_4 = arith.constant 0 : index
    %3 = vector.load %arg0[%c0_3, %c0_4] : memref<40x72xf32, #tpu.memory_space<vmem>>, vector<40x72xf32>
    %c0_5 = arith.constant 0 : index
    %c0_6 = arith.constant 0 : index
    %4 = vector.load %arg3[%c0_5, %c0_6] : memref<1x72xf32, #tpu.memory_space<vmem>>, vector<1x72xf32>
    %c0_7 = arith.constant 0 : index
    %c0_8 = arith.constant 0 : index
    %5 = vector.load %arg4[%c0_7, %c0_8] : memref<1x72xf32, #tpu.memory_space<vmem>>, vector<1x72xf32>
    %6 = arith.mulf %3, %1 : vector<40x72xf32>
    %cst = arith.constant dense<0.000000e+00> : vector<40x72xf32>
    %7 = tpu.matmul %6, %0, %cst {dimension_numbers = #tpu.dot_dimension_numbers<[1], [0], [0], [1], [0, 0, 1, 1], [], []>} : vector<40x72xf32>, vector<72x72xf32>, vector<40x72xf32> -> vector<40x72xf32>
    %cst_9 = arith.constant dense<0.000000e+00> : vector<72xf32>
    %8 = vector.multi_reduction <add>, %7, %cst_9 [0] : vector<40x72xf32> to vector<72xf32>
    %9 = vector.shape_cast %8 : vector<72xf32> to vector<1x72xf32>
    %10 = arith.mulf %6, %6 : vector<40x72xf32>
    %cst_10 = arith.constant dense<0.000000e+00> : vector<40x72xf32>
    %11 = tpu.matmul %10, %0, %cst_10 {dimension_numbers = #tpu.dot_dimension_numbers<[1], [0], [0], [1], [0, 0, 1, 1], [], []>} : vector<40x72xf32>, vector<72x72xf32>, vector<40x72xf32> -> vector<40x72xf32>
    %cst_11 = arith.constant dense<0.000000e+00> : vector<72xf32>
    %12 = vector.multi_reduction <add>, %11, %cst_11 [0] : vector<40x72xf32> to vector<72xf32>
    %13 = vector.shape_cast %12 : vector<72xf32> to vector<1x72xf32>
    %cst_12 = arith.constant 0.001953125 : f32
    %14 = vector.broadcast %cst_12 : f32 to vector<1x72xf32>
    %15 = arith.mulf %9, %14 : vector<1x72xf32>
    %cst_13 = arith.constant 0.001953125 : f32
    %16 = vector.broadcast %cst_13 : f32 to vector<1x72xf32>
    %17 = arith.mulf %13, %16 : vector<1x72xf32>
    %18 = arith.mulf %15, %15 : vector<1x72xf32>
    %19 = arith.subf %17, %18 : vector<1x72xf32>
    %cst_14 = arith.constant 9.99999974E-6 : f32
    %20 = vector.broadcast %cst_14 : f32 to vector<1x72xf32>
    %21 = arith.addf %19, %20 : vector<1x72xf32>
    %22 = math.rsqrt %21 : vector<1x72xf32>
    %23 = arith.mulf %4, %22 : vector<1x72xf32>
    %24 = arith.mulf %15, %23 : vector<1x72xf32>
    %25 = arith.subf %5, %24 : vector<1x72xf32>
    %26 = vector.broadcast %23 : vector<1x72xf32> to vector<40x72xf32>
    %27 = arith.mulf %6, %26 : vector<40x72xf32>
    %28 = vector.broadcast %25 : vector<1x72xf32> to vector<40x72xf32>
    %29 = arith.addf %27, %28 : vector<40x72xf32>
    %cst_15 = arith.constant 0.000000e+00 : f32
    %30 = vector.broadcast %cst_15 : f32 to vector<40x72xf32>
    %31 = arith.cmpf oge, %29, %30 : vector<40x72xf32>
    %cst_16 = arith.constant 0.00999999977 : f32
    %32 = vector.broadcast %cst_16 : f32 to vector<40x72xf32>
    %33 = arith.mulf %32, %29 : vector<40x72xf32>
    %34 = arith.select %31, %29, %33 : vector<40x72xi1>, vector<40x72xf32>
    %35 = arith.mulf %34, %1 : vector<40x72xf32>
    %36 = vector.extract_strided_slice %35 {offsets = [0, 0], sizes = [38, 72], strides = [1, 1]} : vector<40x72xf32> to vector<38x72xf32>
    %c0_17 = arith.constant 0 : index
    %c0_18 = arith.constant 0 : index
    %c0_19 = arith.constant 0 : index
    %37 = vector.load %arg5[%c0_17, %c0_18, %c0_19] : memref<3x72x72xf32, #tpu.memory_space<vmem>>, vector<1x72x72xf32>
    %38 = vector.shape_cast %37 : vector<1x72x72xf32> to vector<72x72xf32>
    %cst_20 = arith.constant dense<0.000000e+00> : vector<38x72xf32>
    %39 = tpu.matmul %36, %38, %cst_20 {dimension_numbers = #tpu.dot_dimension_numbers<[1], [0], [0], [1], [0, 0, 1, 1], [], []>} : vector<38x72xf32>, vector<72x72xf32>, vector<38x72xf32> -> vector<38x72xf32>
    %40 = vector.extract_strided_slice %35 {offsets = [1, 0], sizes = [38, 72], strides = [1, 1]} : vector<40x72xf32> to vector<38x72xf32>
    %c1 = arith.constant 1 : index
    %c0_21 = arith.constant 0 : index
    %c0_22 = arith.constant 0 : index
    %41 = vector.load %arg5[%c1, %c0_21, %c0_22] : memref<3x72x72xf32, #tpu.memory_space<vmem>>, vector<1x72x72xf32>
    %42 = vector.shape_cast %41 : vector<1x72x72xf32> to vector<72x72xf32>
    %cst_23 = arith.constant dense<0.000000e+00> : vector<38x72xf32>
    %43 = tpu.matmul %40, %42, %cst_23 {dimension_numbers = #tpu.dot_dimension_numbers<[1], [0], [0], [1], [0, 0, 1, 1], [], []>} : vector<38x72xf32>, vector<72x72xf32>, vector<38x72xf32> -> vector<38x72xf32>
    %44 = arith.addf %39, %43 : vector<38x72xf32>
    %45 = vector.extract_strided_slice %35 {offsets = [2, 0], sizes = [38, 72], strides = [1, 1]} : vector<40x72xf32> to vector<38x72xf32>
    %c2 = arith.constant 2 : index
    %c0_24 = arith.constant 0 : index
    %c0_25 = arith.constant 0 : index
    %46 = vector.load %arg5[%c2, %c0_24, %c0_25] : memref<3x72x72xf32, #tpu.memory_space<vmem>>, vector<1x72x72xf32>
    %47 = vector.shape_cast %46 : vector<1x72x72xf32> to vector<72x72xf32>
    %cst_26 = arith.constant dense<0.000000e+00> : vector<38x72xf32>
    %48 = tpu.matmul %45, %47, %cst_26 {dimension_numbers = #tpu.dot_dimension_numbers<[1], [0], [0], [1], [0, 0, 1, 1], [], []>} : vector<38x72xf32>, vector<72x72xf32>, vector<38x72xf32> -> vector<38x72xf32>
    %49 = arith.addf %44, %48 : vector<38x72xf32>
    %c0_27 = arith.constant 0 : index
    %c0_28 = arith.constant 0 : index
    %50 = vector.load %arg6[%c0_27, %c0_28] : memref<1x72xf32, #tpu.memory_space<vmem>>, vector<1x72xf32>
    %c0_29 = arith.constant 0 : index
    %c0_30 = arith.constant 0 : index
    %51 = vector.load %arg7[%c0_29, %c0_30] : memref<1x72xf32, #tpu.memory_space<vmem>>, vector<1x72xf32>
    %52 = arith.mulf %49, %2 : vector<38x72xf32>
    %cst_31 = arith.constant dense<0.000000e+00> : vector<38x72xf32>
    %53 = tpu.matmul %52, %0, %cst_31 {dimension_numbers = #tpu.dot_dimension_numbers<[1], [0], [0], [1], [0, 0, 1, 1], [], []>} : vector<38x72xf32>, vector<72x72xf32>, vector<38x72xf32> -> vector<38x72xf32>
    %cst_32 = arith.constant dense<0.000000e+00> : vector<72xf32>
    %54 = vector.multi_reduction <add>, %53, %cst_32 [0] : vector<38x72xf32> to vector<72xf32>
    %55 = vector.shape_cast %54 : vector<72xf32> to vector<1x72xf32>
    %56 = arith.mulf %52, %52 : vector<38x72xf32>
    %cst_33 = arith.constant dense<0.000000e+00> : vector<38x72xf32>
    %57 = tpu.matmul %56, %0, %cst_33 {dimension_numbers = #tpu.dot_dimension_numbers<[1], [0], [0], [1], [0, 0, 1, 1], [], []>} : vector<38x72xf32>, vector<72x72xf32>, vector<38x72xf32> -> vector<38x72xf32>
    %cst_34 = arith.constant dense<0.000000e+00> : vector<72xf32>
    %58 = vector.multi_reduction <add>, %57, %cst_34 [0] : vector<38x72xf32> to vector<72xf32>
    %59 = vector.shape_cast %58 : vector<72xf32> to vector<1x72xf32>
    %cst_35 = arith.constant 0.001953125 : f32
    %60 = vector.broadcast %cst_35 : f32 to vector<1x72xf32>
    %61 = arith.mulf %55, %60 : vector<1x72xf32>
    %cst_36 = arith.constant 0.001953125 : f32
    %62 = vector.broadcast %cst_36 : f32 to vector<1x72xf32>
    %63 = arith.mulf %59, %62 : vector<1x72xf32>
    %64 = arith.mulf %61, %61 : vector<1x72xf32>
    %65 = arith.subf %63, %64 : vector<1x72xf32>
    %cst_37 = arith.constant 9.99999974E-6 : f32
    %66 = vector.broadcast %cst_37 : f32 to vector<1x72xf32>
    %67 = arith.addf %65, %66 : vector<1x72xf32>
    %68 = math.rsqrt %67 : vector<1x72xf32>
    %69 = arith.mulf %50, %68 : vector<1x72xf32>
    %70 = arith.mulf %61, %69 : vector<1x72xf32>
    %71 = arith.subf %51, %70 : vector<1x72xf32>
    %72 = vector.broadcast %69 : vector<1x72xf32> to vector<38x72xf32>
    %73 = arith.mulf %52, %72 : vector<38x72xf32>
    %74 = vector.broadcast %71 : vector<1x72xf32> to vector<38x72xf32>
    %75 = arith.addf %73, %74 : vector<38x72xf32>
    %cst_38 = arith.constant 0.000000e+00 : f32
    %76 = vector.broadcast %cst_38 : f32 to vector<38x72xf32>
    %77 = arith.cmpf oge, %75, %76 : vector<38x72xf32>
    %cst_39 = arith.constant 0.00999999977 : f32
    %78 = vector.broadcast %cst_39 : f32 to vector<38x72xf32>
    %79 = arith.mulf %78, %75 : vector<38x72xf32>
    %80 = arith.select %77, %75, %79 : vector<38x72xi1>, vector<38x72xf32>
    %81 = arith.mulf %80, %2 : vector<38x72xf32>
    %82 = vector.extract_strided_slice %81 {offsets = [0, 0], sizes = [36, 72], strides = [1, 1]} : vector<38x72xf32> to vector<36x72xf32>
    %c0_40 = arith.constant 0 : index
    %c0_41 = arith.constant 0 : index
    %c0_42 = arith.constant 0 : index
    %83 = vector.load %arg8[%c0_40, %c0_41, %c0_42] : memref<3x72x72xf32, #tpu.memory_space<vmem>>, vector<1x72x72xf32>
    %84 = vector.shape_cast %83 : vector<1x72x72xf32> to vector<72x72xf32>
    %cst_43 = arith.constant dense<0.000000e+00> : vector<36x72xf32>
    %85 = tpu.matmul %82, %84, %cst_43 {dimension_numbers = #tpu.dot_dimension_numbers<[1], [0], [0], [1], [0, 0, 1, 1], [], []>} : vector<36x72xf32>, vector<72x72xf32>, vector<36x72xf32> -> vector<36x72xf32>
    %86 = vector.extract_strided_slice %81 {offsets = [1, 0], sizes = [36, 72], strides = [1, 1]} : vector<38x72xf32> to vector<36x72xf32>
    %c1_44 = arith.constant 1 : index
    %c0_45 = arith.constant 0 : index
    %c0_46 = arith.constant 0 : index
    %87 = vector.load %arg8[%c1_44, %c0_45, %c0_46] : memref<3x72x72xf32, #tpu.memory_space<vmem>>, vector<1x72x72xf32>
    %88 = vector.shape_cast %87 : vector<1x72x72xf32> to vector<72x72xf32>
    %cst_47 = arith.constant dense<0.000000e+00> : vector<36x72xf32>
    %89 = tpu.matmul %86, %88, %cst_47 {dimension_numbers = #tpu.dot_dimension_numbers<[1], [0], [0], [1], [0, 0, 1, 1], [], []>} : vector<36x72xf32>, vector<72x72xf32>, vector<36x72xf32> -> vector<36x72xf32>
    %90 = arith.addf %85, %89 : vector<36x72xf32>
    %91 = vector.extract_strided_slice %81 {offsets = [2, 0], sizes = [36, 72], strides = [1, 1]} : vector<38x72xf32> to vector<36x72xf32>
    %c2_48 = arith.constant 2 : index
    %c0_49 = arith.constant 0 : index
    %c0_50 = arith.constant 0 : index
    %92 = vector.load %arg8[%c2_48, %c0_49, %c0_50] : memref<3x72x72xf32, #tpu.memory_space<vmem>>, vector<1x72x72xf32>
    %93 = vector.shape_cast %92 : vector<1x72x72xf32> to vector<72x72xf32>
    %cst_51 = arith.constant dense<0.000000e+00> : vector<36x72xf32>
    %94 = tpu.matmul %91, %93, %cst_51 {dimension_numbers = #tpu.dot_dimension_numbers<[1], [0], [0], [1], [0, 0, 1, 1], [], []>} : vector<36x72xf32>, vector<72x72xf32>, vector<36x72xf32> -> vector<36x72xf32>
    %95 = arith.addf %90, %94 : vector<36x72xf32>
    %96 = vector.extract_strided_slice %3 {offsets = [2, 0], sizes = [36, 72], strides = [1, 1]} : vector<40x72xf32> to vector<36x72xf32>
    %97 = arith.addf %95, %96 : vector<36x72xf32>
    %c0_52 = arith.constant 0 : index
    %c0_53 = arith.constant 0 : index
    %98 = vector.load %arg9[%c0_52, %c0_53] : memref<36x72xf32, #tpu.memory_space<vmem>>, vector<36x72xf32>
    tpu.vector_store %arg9[%c0_52, %c0_53], %97 {strides = array<i32>} : memref<36x72xf32, #tpu.memory_space<vmem>>, vector<36x72xf32>,
    return
  }
}

</mosaic_0001>

<llo_original>
// kernel: tpu_custom_call.1
$region0: #{tpu_custom_call.1}
  #allocation0 [shape = 'u32[]', space=smem, size = 0x4, offset = 0x4, fixed_abs, tag = 'smem constant byte address 0x4 - core index']
  #allocation1 [shape = 'u32[144,128]{1,0:T(1,128)}', space=vmem, size = 0x12000, scoped, tag = 'internal scratch']
  %s0 = inlined_call_operand.hbm [shape: f32[40,72], index: 0, kind: input, shape index: {}]
  %s1 = inlined_call_operand.hbm [shape: f32[40,72], index: 1, kind: input, shape index: {}]
  %s2 = inlined_call_operand.hbm [shape: f32[72,72], index: 2, kind: input, shape index: {}]
  %s3 = inlined_call_operand.vmem [shape: f32[1,72], index: 3, kind: input, shape index: {}]
  %s4 = inlined_call_operand.vmem [shape: f32[1,72], index: 4, kind: input, shape index: {}]
  %s5 = inlined_call_operand.hbm [shape: f32[3,72,72], index: 5, kind: input, shape index: {}]
  %s6 = inlined_call_operand.vmem [shape: f32[1,72], index: 6, kind: input, shape index: {}]
  %s7 = inlined_call_operand.vmem [shape: f32[1,72], index: 7, kind: input, shape index: {}]
  %s8 = inlined_call_operand.hbm [shape: f32[3,72,72], index: 8, kind: input, shape index: {}]
  %s9 = inlined_call_operand.hbm [shape: f32[36,72], index: 9, kind: output, shape index: {}]
  %s10 = sld [smem:[#allocation0]]
  $region66: #{tpu_custom_call.1} parent=0
    _
  %s12 = ssub.s32 1, %s10
  %s13 = scalar_select 0, %s12, %s10
  $region1: #{tpu_custom_call.1} parent=0
    #allocation2 [shape = 'u8[20480]{0}', space=vmem, size = 0x5000, scoped, tag = 'input window, operand 0, single buffered']
    #allocation3 [shape = 's32[1]{0}', space=sflag, size = 0x4, scoped, tag = 'scoped memory for tpu_custom_call.1']
    #allocation4 [shape = 's32[1]{0}', space=sflag, size = 0x4, scoped, tag = 'scoped memory for tpu_custom_call.1']
    #allocation5 [shape = 'u8[20480]{0}', space=vmem, size = 0x5000, scoped, tag = 'input window, operand 1, single buffered']
    #allocation6 [shape = 's32[1]{0}', space=sflag, size = 0x4, scoped, tag = 'scoped memory for tpu_custom_call.1']
    #allocation7 [shape = 'u8[36864]{0}', space=vmem, size = 0x9000, scoped, tag = 'input window, operand 2, single buffered']
    #allocation8 [shape = 'u8[110592]{0}', space=vmem, size = 0x1b000, scoped, tag = 'input window, operand 5, single buffered']
    #allocation9 [shape = 's32[1]{0}', space=sflag, size = 0x4, scoped, tag = 'scoped memory for tpu_custom_call.1']
    #allocation10 [shape = 'u8[110592]{0}', space=vmem, size = 0x1b000, scoped, tag = 'input window, operand 8, single buffered']
    #allocation11 [shape = 'u8[20480]{0}', space=vmem, size = 0x5000, scoped, tag = 'output window, operand 0, single buffered']
    %14 = vsyncpa [#allocation3], 0
    %15 = vsyncpa [#allocation6], 0
    %16 = vsyncpa [#allocation9], 0
    %17 = vsyncpa [#allocation4], 0
    // Predicated region
    $region2: #{tpu_custom_call.1} parent=1 // pred_check
      _
    $region3: #{tpu_custom_call.1} parent=1 // pred_check_branch
      %19 = sbr.rel (0) target = $region5
    $region4: #{tpu_custom_call.1} parent=1 // pred_region
      %s21 = ssub.s32 640, 640
      %22 = vsyncadd [#allocation3], %s21
      %s23 = sshll.u32 [#allocation2], 4
      %s24 = int_to_ptr.vmem [resolvable:$true] %s23
      %29 = dma.hbm_to_vmem [thread:$0]  %s0, 640, %s24, [#allocation3], 128, 128, 8
    $region5: #{tpu_custom_call.1} parent=1 // pred_fallthru
      _
    // Predicated region
    $region6: #{tpu_custom_call.1} parent=1 // pred_check
      _
    $region7: #{tpu_custom_call.1} parent=1 // pred_check_branch
      %31 = sbr.rel (0) target = $region9
    $region8: #{tpu_custom_call.1} parent=1 // pred_region
      %s33 = ssub.s32 640, 640
      %34 = vsyncadd [#allocation6], %s33
      %s35 = sshll.u32 [#allocation5], 4
      %s36 = int_to_ptr.vmem [resolvable:$true] %s35
      %41 = dma.hbm_to_vmem [thread:$0]  %s1, 640, %s36, [#allocation6], 128, 128, 8
    $region9: #{tpu_custom_call.1} parent=1 // pred_fallthru
      _
    // Predicated region
    $region10: #{tpu_custom_call.1} parent=1 // pred_check
      _
    $region11: #{tpu_custom_call.1} parent=1 // pred_check_branch
      %43 = sbr.rel (0) target = $region13
    $region12: #{tpu_custom_call.1} parent=1 // pred_region
      %s45 = ssub.s32 1152, 1152
      %46 = vsyncadd [#allocation6], %s45
      %s47 = sshll.u32 [#allocation7], 4
      %s48 = int_to_ptr.vmem [resolvable:$true] %s47
      %53 = dma.hbm_to_vmem [thread:$0]  %s2, 1152, %s48, [#allocation6], 128, 128, 8
    $region13: #{tpu_custom_call.1} parent=1 // pred_fallthru
      _
    // Predicated region
    $region14: #{tpu_custom_call.1} parent=1 // pred_check
      _
    $region15: #{tpu_custom_call.1} parent=1 // pred_check_branch
      %55 = sbr.rel (0) target = $region17
    $region16: #{tpu_custom_call.1} parent=1 // pred_region
      _
    $region17: #{tpu_custom_call.1} parent=1 // pred_fallthru
      _
    // Predicated region
    $region18: #{tpu_custom_call.1} parent=1 // pred_check
      _
    $region19: #{tpu_custom_call.1} parent=1 // pred_check_branch
      %57 = sbr.rel (0) target = $region21
    $region20: #{tpu_custom_call.1} parent=1 // pred_region
      _
    $region21: #{tpu_custom_call.1} parent=1 // pred_fallthru
      _
    // Predicated region
    $region22: #{tpu_custom_call.1} parent=1 // pred_check
      _
    $region23: #{tpu_custom_call.1} parent=1 // pred_check_branch
      %59 = sbr.rel (0) target = $region25
    $region24: #{tpu_custom_call.1} parent=1 // pred_region
      %s61 = ssub.s32 3456, 3456
      %62 = vsyncadd [#allocation9], %s61
      %s63 = sshll.u32 [#allocation8], 4
      %s64 = int_to_ptr.vmem [resolvable:$true] %s63
      %69 = dma.hbm_to_vmem [thread:$0]  %s5, 3456, %s64, [#allocation9], 128, 128, 8
    $region25: #{tpu_custom_call.1} parent=1 // pred_fallthru
      _
    // Predicated region
    $region26: #{tpu_custom_call.1} parent=1 // pred_check
      _
    $region27: #{tpu_custom_call.1} parent=1 // pred_check_branch
      %71 = sbr.rel (0) target = $region29
    $region28: #{tpu_custom_call.1} parent=1 // pred_region
      _
    $region29: #{tpu_custom_call.1} parent=1 // pred_fallthru
      _
    // Predicated region
    $region30: #{tpu_custom_call.1} parent=1 // pred_check
      _
    $region31: #{tpu_custom_call.1} parent=1 // pred_check_branch
      %73 = sbr.rel (0) target = $region33
    $region32: #{tpu_custom_call.1} parent=1 // pred_region
      _
    $region33: #{tpu_custom_call.1} parent=1 // pred_fallthru
      _
    // Predicated region
    $region34: #{tpu_custom_call.1} parent=1 // pred_check
      _
    $region35: #{tpu_custom_call.1} parent=1 // pred_check_branch
      %75 = sbr.rel (0) target = $region37
    $region36: #{tpu_custom_call.1} parent=1 // pred_region
      %s77 = ssub.s32 3456, 3456
      %78 = vsyncadd [#allocation9], %s77
      %s79 = sshll.u32 [#allocation10], 4
      %s80 = int_to_ptr.vmem [resolvable:$true] %s79
      %85 = dma.hbm_to_vmem [thread:$0]  %s8, 3456, %s80, [#allocation9], 128, 128, 8
    $region37: #{tpu_custom_call.1} parent=1 // pred_fallthru
      _
    // Predicated region
    $region38: #{tpu_custom_call.1} parent=1 // pred_check
      _
    $region39: #{tpu_custom_call.1} parent=1 // pred_check_branch
      %87 = sbr.rel (0) target = $region41
    $region40: #{tpu_custom_call.1} parent=1 // pred_region
      %88 = dma.done [#allocation3], 640
    $region41: #{tpu_custom_call.1} parent=1 // pred_fallthru
      _
    // Predicated region
    $region42: #{tpu_custom_call.1} parent=1 // pred_check
      _
    $region43: #{tpu_custom_call.1} parent=1 // pred_check_branch
      %90 = sbr.rel (0) target = $region45
    $region44: #{tpu_custom_call.1} parent=1 // pred_region
      %91 = dma.done [#allocation6], 640
    $region45: #{tpu_custom_call.1} parent=1 // pred_fallthru
      _
    // Predicated region
    $region46: #{tpu_custom_call.1} parent=1 // pred_check
      _
    $region47: #{tpu_custom_call.1} parent=1 // pred_check_branch
      %93 = sbr.rel (0) target = $region49
    $region48: #{tpu_custom_call.1} parent=1 // pred_region
      %94 = dma.done [#allocation6], 1152
    $region49: #{tpu_custom_call.1} parent=1 // pred_fallthru
      _
    // Predicated region
    $region50: #{tpu_custom_call.1} parent=1 // pred_check
      _
    $region51: #{tpu_custom_call.1} parent=1 // pred_check_branch
      %96 = sbr.rel (0) target = $region53
    $region52: #{tpu_custom_call.1} parent=1 // pred_region
      %97 = dma.done [#allocation9], 3456
    $region53: #{tpu_custom_call.1} parent=1 // pred_fallthru
      _
    // Predicated region
    $region54: #{tpu_custom_call.1} parent=1 // pred_check
      _
    $region55: #{tpu_custom_call.1} parent=1 // pred_check_branch
      %99 = sbr.rel (0) target = $region57
    $region56: #{tpu_custom_call.1} parent=1 // pred_region
      %100 = dma.done [#allocation9], 3456
    $region57: #{tpu_custom_call.1} parent=1 // pred_fallthru
      _
    %v101 = vld [vmem:[#allocation7] sm:$0xff]
    %v102 = vld [vmem:[#allocation7 + $0x8] sm:$0xff]
    %v103 = vld [vmem:[#allocation7 + $0x10] sm:$0xff]
    %v104 = vld [vmem:[#allocation7 + $0x18] sm:$0xff]
    %v105 = vld [vmem:[#allocation7 + $0x20] sm:$0xff]
    %v106 = vld [vmem:[#allocation7 + $0x28] sm:$0xff]
    %v107 = vld [vmem:[#allocation7 + $0x30] sm:$0xff]
    %v108 = vld [vmem:[#allocation7 + $0x38] sm:$0xff]
    %v109 = vld [vmem:[#allocation7 + $0x40] sm:$0xff]
    %v110 = vld [vmem:[#allocation5] sm:$0xff]
    %v111 = vld [vmem:[#allocation5 + $0x8] sm:$0xff]
    %v112 = vld [vmem:[#allocation5 + $0x10] sm:$0xff]
    %v113 = vld [vmem:[#allocation5 + $0x18] sm:$0xff]
    %v114 = vld [vmem:[#allocation5 + $0x20] sm:$0xff]
    %v115 = vld [vmem:[#allocation2] sm:$0xff]
    %v116 = vld [vmem:[#allocation2 + $0x8] sm:$0xff]
    %v117 = vld [vmem:[#allocation2 + $0x10] sm:$0xff]
    %v118 = vld [vmem:[#allocation2 + $0x18] sm:$0xff]
    %v119 = vld [vmem:[#allocation2 + $0x20] sm:$0xff]
    %v120 = vld [vmem:[%s3] sm:$0x1]
    %v121 = vld [vmem:[%s4] sm:$0x1]
    %v122 = vmul.f32 %v115, %v110
    %v123 = vmul.f32 %v116, %v111
    %v124 = vmul.f32 %v117, %v112
    %v125 = vmul.f32 %v118, %v113
    %v126 = vmul.f32 %v119, %v114
    %vm127 = vcmask 588800
    %v129 = vsel %vm127, %v122, 0
    %v132 = vsel %vm127, %v123, 0
    %v135 = vsel %vm127, %v124, 0
    %v138 = vsel %vm127, %v125, 0
    %v141 = vsel %vm127, %v126, 0
    %143 = vmatprep.subr.mxu0 0.0
    %144 = vmatpush1.msra.mxu0 %v101
    %145 = vmatprep.subr.mxu0 0.0
    %146 = vmatpush1.msra.mxu0 %v102
    %147 = vmatprep.subr.mxu0 0.0
    %148 = vmatpush1.msra.mxu0 %v103
    %149 = vmatprep.subr.mxu0 0.0
    %150 = vmatpush1.msra.mxu0 %v104
    %151 = vmatprep.subr.mxu0 0.0
    %152 = vmatpush1.msra.mxu0 %v105
    %153 = vmatprep.subr.mxu0 0.0
    %154 = vmatpush1.msra.mxu0 %v106
    %155 = vmatprep.subr.mxu0 0.0
    %156 = vmatpush1.msra.mxu0 %v107
    %157 = vmatprep.subr.mxu0 0.0
    %158 = vmatpush1.msra.mxu0 %v108
    %159 = vmatprep.subr.mxu0 0.0
    %160 = vmatpush1.msra.mxu0 %v109
    %161 = vmatprep.subr.mxu0 0.0
    %162 = vmatpush1.msra.mxu0 0.0
    %163 = vmatprep.subr.mxu0 0.0
    %164 = vmatpush1.msra.mxu0 0.0
    %165 = vmatprep.subr.mxu0 0.0
    %166 = vmatpush1.msra.mxu0 0.0
    %167 = vmatprep.subr.mxu0 0.0
    %168 = vmatpush1.msra.mxu0 0.0
    %169 = vmatprep.subr.mxu0 0.0
    %170 = vmatpush1.msra.mxu0 0.0
    %171 = vmatprep.subr.mxu0 0.0
    %172 = vmatpush1.msra.mxu0 0.0
    %173 = vmatprep.subr.mxu0 0.0
    %174 = vmatpush1.msra.mxu0 0.0
    %175 = vmatprep.subr.mxu0 0.0
    %176 = vmatpush1.msra.mxu0 0.0
    %177 = vmatprep.subr.mxu0 0.0
    %178 = vmatpush1.msra.mxu0 0.0
    %179 = vmatprep.subr.mxu0 0.0
    %180 = vmatpush1.msra.mxu0 0.0
    %181 = vmatprep.subr.mxu0 0.0
    %182 = vmatpush1.msra.mxu0 0.0
    %183 = vmatprep.subr.mxu0 0.0
    %184 = vmatpush1.msra.mxu0 0.0
    %185 = vmatprep.subr.mxu0 0.0
    %186 = vmatpush1.msra.mxu0 0.0
    %187 = vmatprep.subr.mxu0 0.0
    %188 = vmatpush1.msra.mxu0 0.0
    %189 = vmatprep.subr.mxu0 0.0
    %190 = vmatpush1.msra.mxu0 0.0
    %191 = vmatprep.subr.mxu0 0.0
    %192 = vmatpush1.msra.mxu0 0.0
    %193 = vmatprep.subr.mxu0 0.0
    %194 = vmatpush1.msra.mxu0 0.0
    %195 = vmatprep.subr.mxu0 0.0
    %196 = vmatpush1.msra.mxu0 0.0
    %197 = vmatprep.subr.mxu0 0.0
    %198 = vmatpush1.msra.mxu0 0.0
    %199 = vmatprep.subr.mxu0 0.0
    %200 = vmatpush1.msra.mxu0 0.0
    %201 = vmatprep.subr.mxu0 0.0
    %202 = vmatpush1.msra.mxu0 0.0
    %203 = vmatprep.subr.mxu0 0.0
    %204 = vmatpush1.msra.mxu0 0.0
    %205 = vmatprep.subr.mxu0 0.0
    %206 = vmatpush1.msra.mxu0 0.0
    %207 = vmatprep.mubr.f32.mxu0 0.0
    %208 = vmatmul.mubr.f32.gmra.mrb[0].mxu0 %v129
    %v209 = vpop.f32.mrb[0].mxu0
    %v210 = vadd.f32 0.0, %v209
    %v211 = vpop.f32.mrb[0].mxu0
    %212 = vmatprep.mubr.f32.mxu0 0.0
    %213 = vmatmul.mubr.f32.gmra.mrb[0].mxu0 %v132
    %v214 = vpop.f32.mrb[0].mxu0
    %v215 = vadd.f32 0.0, %v214
    %v216 = vpop.f32.mrb[0].mxu0
    %217 = vmatprep.mubr.f32.mxu0 0.0
    %218 = vmatmul.mubr.f32.gmra.mrb[0].mxu0 %v135
    %v219 = vpop.f32.mrb[0].mxu0
    %v220 = vadd.f32 0.0, %v219
    %v221 = vpop.f32.mrb[0].mxu0
    %222 = vmatprep.mubr.f32.mxu0 0.0
    %223 = vmatmul.mubr.f32.gmra.mrb[0].mxu0 %v138
    %v224 = vpop.f32.mrb[0].mxu0
    %v225 = vadd.f32 0.0, %v224
    %v226 = vpop.f32.mrb[0].mxu0
    %227 = vmatprep.mubr.f32.mxu0 0.0
    %228 = vmatmul.mubr.f32.gmra.mrb[0].mxu0 %v141
    %v229 = vpop.f32.mrb[0].mxu0
    %v230 = vadd.f32 0.0, %v229
    %v231 = vpop.f32.mrb[0].mxu0
    %232 = vdwg.mxu0
    %v233 = vsel %vm127, %v210, 0.0
    %v234 = vsel %vm127, %v215, 0.0
    %v235 = vadd.f32 %v233, %v234
    %v236 = vsel %vm127, %v220, 0.0
    %v237 = vadd.f32 %v235, %v236
    %v238 = vsel %vm127, %v225, 0.0
    %v239 = vadd.f32 %v237, %v238
    %v240 = vsel %vm127, %v230, 0.0
    %v241 = vadd.f32 %v239, %v240
    %v242 = vrot.slane %v241, 4
    %v243 = vadd.f32 %v241, %v242
    %v244 = vrot.slane %v243, 2
    %v245 = vadd.f32 %v243, %v244
    %v246 = vrot.slane %v245, 1
    %v247 = vadd.f32 %v245, %v246
    %v248 = vmul.f32 %v122, %v122
    %v249 = vmul.f32 %v123, %v123
    %v250 = vmul.f32 %v124, %v124
    %v251 = vmul.f32 %v125, %v125
    %v252 = vmul.f32 %v126, %v126
    %v254 = vsel %vm127, %v248, 0
    %v257 = vsel %vm127, %v249, 0
    %v260 = vsel %vm127, %v250, 0
    %v263 = vsel %vm127, %v251, 0
    %v266 = vsel %vm127, %v252, 0
    %268 = vmatprep.subr.mxu0 0.0
    %269 = vmatpush1.msra.mxu0 %v101
    %270 = vmatprep.subr.mxu0 0.0
    %271 = vmatpush1.msra.mxu0 %v102
    %272 = vmatprep.subr.mxu0 0.0
    %273 = vmatpush1.msra.mxu0 %v103
    %274 = vmatprep.subr.mxu0 0.0
    %275 = vmatpush1.msra.mxu0 %v104
    %276 = vmatprep.subr.mxu0 0.0
    %277 = vmatpush1.msra.mxu0 %v105
    %278 = vmatprep.subr.mxu0 0.0
    %279 = vmatpush1.msra.mxu0 %v106
    %280 = vmatprep.subr.mxu0 0.0
    %281 = vmatpush1.msra.mxu0 %v107
    %282 = vmatprep.subr.mxu0 0.0
    %283 = vmatpush1.msra.mxu0 %v108
    %284 = vmatprep.subr.mxu0 0.0
    %285 = vmatpush1.msra.mxu0 %v109
    %286 = vmatprep.subr.mxu0 0.0
    %287 = vmatpush1.msra.mxu0 0.0
    %288 = vmatprep.subr.mxu0 0.0
    %289 = vmatpush1.msra.mxu0 0.0
    %290 = vmatprep.subr.mxu0 0.0
    %291 = vmatpush1.msra.mxu0 0.0
    %292 = vmatprep.subr.mxu0 0.0
    %293 = vmatpush1.msra.mxu0 0.0
    %294 = vmatprep.subr.mxu0 0.0
    %295 = vmatpush1.msra.mxu0 0.0
    %296 = vmatprep.subr.mxu0 0.0
    %297 = vmatpush1.msra.mxu0 0.0
    %298 = vmatprep.subr.mxu0 0.0
    %299 = vmatpush1.msra.mxu0 0.0
    %300 = vmatprep.subr.mxu0 0.0
    %301 = vmatpush1.msra.mxu0 0.0
    %302 = vmatprep.subr.mxu0 0.0
    %303 = vmatpush1.msra.mxu0 0.0
    %304 = vmatprep.subr.mxu0 0.0
    %305 = vmatpush1.msra.mxu0 0.0
    %306 = vmatprep.subr.mxu0 0.0
    %307 = vmatpush1.msra.mxu0 0.0
    %308 = vmatprep.subr.mxu0 0.0
    %309 = vmatpush1.msra.mxu0 0.0
    %310 = vmatprep.subr.mxu0 0.0
    %311 = vmatpush1.msra.mxu0 0.0
    %312 = vmatprep.subr.mxu0 0.0
    %313 = vmatpush1.msra.mxu0 0.0
    %314 = vmatprep.subr.mxu0 0.0
    %315 = vmatpush1.msra.mxu0 0.0
    %316 = vmatprep.subr.mxu0 0.0
    %317 = vmatpush1.msra.mxu0 0.0
    %318 = vmatprep.subr.mxu0 0.0
    %319 = vmatpush1.msra.mxu0 0.0
    %320 = vmatprep.subr.mxu0 0.0
    %321 = vmatpush1.msra.mxu0 0.0
    %322 = vmatprep.subr.mxu0 0.0
    %323 = vmatpush1.msra.mxu0 0.0
    %324 = vmatprep.subr.mxu0 0.0
    %325 = vmatpush1.msra.mxu0 0.0
    %326 = vmatprep.subr.mxu0 0.0
    %327 = vmatpush1.msra.mxu0 0.0
    %328 = vmatprep.subr.mxu0 0.0
    %329 = vmatpush1.msra.mxu0 0.0
    %330 = vmatprep.subr.mxu0 0.0
    %331 = vmatpush1.msra.mxu0 0.0
    %332 = vmatprep.mubr.f32.mxu0 0.0
    %333 = vmatmul.mubr.f32.gmra.mrb[0].mxu0 %v254
    %v334 = vpop.f32.mrb[0].mxu0
    %v335 = vadd.f32 0.0, %v334
    %v336 = vpop.f32.mrb[0].mxu0
    %337 = vmatprep.mubr.f32.mxu0 0.0
    %338 = vmatmul.mubr.f32.gmra.mrb[0].mxu0 %v257
    %v339 = vpop.f32.mrb[0].mxu0
    %v340 = vadd.f32 0.0, %v339
    %v341 = vpop.f32.mrb[0].mxu0
    %342 = vmatprep.mubr.f32.mxu0 0.0
    %343 = vmatmul.mubr.f32.gmra.mrb[0].mxu0 %v260
    %v344 = vpop.f32.mrb[0].mxu0
    %v345 = vadd.f32 0.0, %v344
    %v346 = vpop.f32.mrb[0].mxu0
    %347 = vmatprep.mubr.f32.mxu0 0.0
    %348 = vmatmul.mubr.f32.gmra.mrb[0].mxu0 %v263
    %v349 = vpop.f32.mrb[0].mxu0
    %v350 = vadd.f32 0.0, %v349
    %v351 = vpop.f32.mrb[0].mxu0
    %352 = vmatprep.mubr.f32.mxu0 0.0
    %353 = vmatmul.mubr.f32.gmra.mrb[0].mxu0 %v266
    %v354 = vpop.f32.mrb[0].mxu0
    %v355 = vadd.f32 0.0, %v354
    %v356 = vpop.f32.mrb[0].mxu0
    %357 = vdwg.mxu0
    %v358 = vsel %vm127, %v335, 0.0
    %v359 = vsel %vm127, %v340, 0.0
    %v360 = vadd.f32 %v358, %v359
    %v361 = vsel %vm127, %v345, 0.0
    %v362 = vadd.f32 %v360, %v361
    %v363 = vsel %vm127, %v350, 0.0
    %v364 = vadd.f32 %v362, %v363
    %v365 = vsel %vm127, %v355, 0.0
    %v366 = vadd.f32 %v364, %v365
    %v367 = vrot.slane %v366, 4
    %v368 = vadd.f32 %v366, %v367
    %v369 = vrot.slane %v368, 2
    %v370 = vadd.f32 %v368, %v369
    %v371 = vrot.slane %v370, 1
    %v372 = vadd.f32 %v370, %v371
    %v373 = vmul.f32 %v247, 0.001953125
    %v374 = vmul.f32 %v372, 0.001953125
    %v375 = vmul.f32 %v373, %v373
    %v376 = vsub.f32 %v374, %v375
    %v377 = vadd.f32 %v376, 1e-05
    %v378 = vrsqrt.pop %v377
    %v379 = vmul.f32 %v120, %v378
    %v380 = vmul.f32 %v373, %v379
    %v381 = vsub.f32 %v121, %v380
    %v383 = vlaneseq
    %v384 = vshrl.u32 %v383, 7
    %v385 = vsub.s32 0, %v384
    %v386 = vrot.slane %v379, %v385
    %v388 = vmul.f32 %v122, %v386
    %v389 = vmul.f32 %v123, %v386
    %v390 = vmul.f32 %v124, %v386
    %v391 = vmul.f32 %v125, %v386
    %v392 = vmul.f32 %v126, %v386
    %v394 = vlaneseq
    %v395 = vshrl.u32 %v394, 7
    %v396 = vsub.s32 0, %v395
    %v397 = vrot.slane %v381, %v396
    %v399 = vadd.f32 %v388, %v397
    %v400 = vadd.f32 %v389, %v397
    %v401 = vadd.f32 %v390, %v397
    %v402 = vadd.f32 %v391, %v397
    %v403 = vadd.f32 %v392, %v397
    %vm404 = vcmp.ge.f32.partialorder %v399, 0.0
    %vm405 = vcmp.ge.f32.partialorder %v400, 0.0
    %vm406 = vcmp.ge.f32.partialorder %v401, 0.0
    %vm407 = vcmp.ge.f32.partialorder %v402, 0.0
    %vm408 = vcmp.ge.f32.partialorder %v403, 0.0
    %v409 = vmul.f32 %v399, 0.01
    %v410 = vmul.f32 %v400, 0.01
    %v411 = vmul.f32 %v401, 0.01
    %v412 = vmul.f32 %v402, 0.01
    %v413 = vmul.f32 %v403, 0.01
    %v414 = vsel %vm404, %v399, %v409
    %v415 = vsel %vm405, %v400, %v410
    %v416 = vsel %vm406, %v401, %v411
    %v417 = vsel %vm407, %v402, %v412
    %v418 = vsel %vm408, %v403, %v413
    %v419 = vmul.f32 %v414, %v110
    %v420 = vmul.f32 %v415, %v111
    %v421 = vmul.f32 %v416, %v112
    %v422 = vmul.f32 %v417, %v113
    %v423 = vmul.f32 %v418, %v114
    %v424 = vld [vmem:[#allocation8] sm:$0xff]
    %v425 = vld [vmem:[#allocation8 + $0x8] sm:$0xff]
    %v426 = vld [vmem:[#allocation8 + $0x10] sm:$0xff]
    %v427 = vld [vmem:[#allocation8 + $0x18] sm:$0xff]
    %v428 = vld [vmem:[#allocation8 + $0x20] sm:$0xff]
    %v429 = vld [vmem:[#allocation8 + $0x28] sm:$0xff]
    %v430 = vld [vmem:[#allocation8 + $0x30] sm:$0xff]
    %v431 = vld [vmem:[#allocation8 + $0x38] sm:$0xff]
    %v432 = vld [vmem:[#allocation8 + $0x40] sm:$0xff]
    %s433 = scalar_lea.vmem [#allocation8], 72
    %v434 = vld [vmem:[%s433] sm:$0xff]
    %v435 = vld [vmem:[%s433 + $0x8] sm:$0xff]
    %v436 = vld [vmem:[%s433 + $0x10] sm:$0xff]
    %v437 = vld [vmem:[%s433 + $0x18] sm:$0xff]
    %v438 = vld [vmem:[%s433 + $0x20] sm:$0xff]
    %v439 = vld [vmem:[%s433 + $0x28] sm:$0xff]
    %v440 = vld [vmem:[%s433 + $0x30] sm:$0xff]
    %v441 = vld [vmem:[%s433 + $0x38] sm:$0xff]
    %v442 = vld [vmem:[%s433 + $0x40] sm:$0xff]
    %vm448 = vcmask 1046528
    %v449 = vrot.slane %v419, 1
    %v450 = vrot.slane %v420, 1
    %v451 = vsel %vm448, %v449, %v450
    %v452 = vrot.slane %v421, 1
    %v453 = vsel %vm448, %v450, %v452
    %v454 = vrot.slane %v422, 1
    %v455 = vsel %vm448, %v452, %v454
    %v456 = vrot.slane %v423, 1
    %v457 = vsel %vm448, %v454, %v456
    %v458 = vsel %vm127, %v451, 0
    %v460 = vsel %vm127, %v453, 0
    %v462 = vsel %vm127, %v455, 0
    %v464 = vsel %vm127, %v457, 0
    %v466 = vsel %vm127, %v456, 0
    %468 = vmatprep.subr.mxu0 0.0
    %469 = vmatpush1.msra.mxu0 %v434
    %470 = vmatprep.subr.mxu0 0.0
    %471 = vmatpush1.msra.mxu0 %v435
    %472 = vmatprep.subr.mxu0 0.0
    %473 = vmatpush1.msra.mxu0 %v436
    %474 = vmatprep.subr.mxu0 0.0
    %475 = vmatpush1.msra.mxu0 %v437
    %476 = vmatprep.subr.mxu0 0.0
    %477 = vmatpush1.msra.mxu0 %v438
    %478 = vmatprep.subr.mxu0 0.0
    %479 = vmatpush1.msra.mxu0 %v439
    %480 = vmatprep.subr.mxu0 0.0
    %481 = vmatpush1.msra.mxu0 %v440
    %482 = vmatprep.subr.mxu0 0.0
    %483 = vmatpush1.msra.mxu0 %v441
    %484 = vmatprep.subr.mxu0 0.0
    %485 = vmatpush1.msra.mxu0 %v442
    %486 = vmatprep.subr.mxu0 0.0
    %487 = vmatpush1.msra.mxu0 0.0
    %488 = vmatprep.subr.mxu0 0.0
    %489 = vmatpush1.msra.mxu0 0.0
    %490 = vmatprep.subr.mxu0 0.0
    %491 = vmatpush1.msra.mxu0 0.0
    %492 = vmatprep.subr.mxu0 0.0
    %493 = vmatpush1.msra.mxu0 0.0
    %494 = vmatprep.subr.mxu0 0.0
    %495 = vmatpush1.msra.mxu0 0.0
    %496 = vmatprep.subr.mxu0 0.0
    %497 = vmatpush1.msra.mxu0 0.0
    %498 = vmatprep.subr.mxu0 0.0
    %499 = vmatpush1.msra.mxu0 0.0
    %500 = vmatprep.subr.mxu0 0.0
    %501 = vmatpush1.msra.mxu0 0.0
    %502 = vmatprep.subr.mxu0 0.0
    %503 = vmatpush1.msra.mxu0 0.0
    %504 = vmatprep.subr.mxu0 0.0
    %505 = vmatpush1.msra.mxu0 0.0
    %506 = vmatprep.subr.mxu0 0.0
    %507 = vmatpush1.msra.mxu0 0.0
    %508 = vmatprep.subr.mxu0 0.0
    %509 = vmatpush1.msra.mxu0 0.0
    %510 = vmatprep.subr.mxu0 0.0
    %511 = vmatpush1.msra.mxu0 0.0
    %512 = vmatprep.subr.mxu0 0.0
    %513 = vmatpush1.msra.mxu0 0.0
    %514 = vmatprep.subr.mxu0 0.0
    %515 = vmatpush1.msra.mxu0 0.0
    %516 = vmatprep.subr.mxu0 0.0
    %517 = vmatpush1.msra.mxu0 0.0
    %518 = vmatprep.subr.mxu0 0.0
    %519 = vmatpush1.msra.mxu0 0.0
    %520 = vmatprep.subr.mxu0 0.0
    %521 = vmatpush1.msra.mxu0 0.0
    %522 = vmatprep.subr.mxu0 0.0
    %523 = vmatpush1.msra.mxu0 0.0
    %524 = vmatprep.subr.mxu0 0.0
    %525 = vmatpush1.msra.mxu0 0.0
    %526 = vmatprep.subr.mxu0 0.0
    %527 = vmatpush1.msra.mxu0 0.0
    %528 = vmatprep.subr.mxu0 0.0
    %529 = vmatpush1.msra.mxu0 0.0
    %530 = vmatprep.subr.mxu0 0.0
    %531 = vmatpush1.msra.mxu0 0.0
    %532 = vmatprep.mubr.f32.mxu0 0.0
    %533 = vmatmul.mubr.f32.gmra.mrb[0].mxu0 %v458
    %v534 = vpop.f32.mrb[0].mxu0
    %v535 = vadd.f32 0.0, %v534
    %v536 = vpop.f32.mrb[0].mxu0
    %537 = vmatprep.mubr.f32.mxu0 0.0
    %538 = vmatmul.mubr.f32.gmra.mrb[0].mxu0 %v460
    %v539 = vpop.f32.mrb[0].mxu0
    %v540 = vadd.f32 0.0, %v539
    %v541 = vpop.f32.mrb[0].mxu0
    %542 = vmatprep.mubr.f32.mxu0 0.0
    %543 = vmatmul.mubr.f32.gmra.mrb[0].mxu0 %v462
    %v544 = vpop.f32.mrb[0].mxu0
    %v545 = vadd.f32 0.0, %v544
    %v546 = vpop.f32.mrb[0].mxu0
    %547 = vmatprep.mubr.f32.mxu0 0.0
    %548 = vmatmul.mubr.f32.gmra.mrb[0].mxu0 %v464
    %v549 = vpop.f32.mrb[0].mxu0
    %v550 = vadd.f32 0.0, %v549
    %v551 = vpop.f32.mrb[0].mxu0
    %552 = vmatprep.mubr.f32.mxu0 0.0
    %553 = vmatmul.mubr.f32.gmra.mrb[0].mxu0 %v466
    %v554 = vpop.f32.mrb[0].mxu0
    %v555 = vadd.f32 0.0, %v554
    %v556 = vpop.f32.mrb[0].mxu0
    %557 = vdwg.mxu0
    %v558 = vsel %vm127, %v419, 0
    %v560 = vsel %vm127, %v420, 0
    %v562 = vsel %vm127, %v421, 0
    %v564 = vsel %vm127, %v422, 0
    %v566 = vsel %vm127, %v423, 0
    %568 = vmatprep.subr.mxu0 0.0
    %569 = vmatpush1.msra.mxu0 %v424
    %570 = vmatprep.subr.mxu0 0.0
    %571 = vmatpush1.msra.mxu0 %v425
    %572 = vmatprep.subr.mxu0 0.0
    %573 = vmatpush1.msra.mxu0 %v426
    %574 = vmatprep.subr.mxu0 0.0
    %575 = vmatpush1.msra.mxu0 %v427
    %576 = vmatprep.subr.mxu0 0.0
    %577 = vmatpush1.msra.mxu0 %v428
    %578 = vmatprep.subr.mxu0 0.0
    %579 = vmatpush1.msra.mxu0 %v429
    %580 = vmatprep.subr.mxu0 0.0
    %581 = vmatpush1.msra.mxu0 %v430
    %582 = vmatprep.subr.mxu0 0.0
    %583 = vmatpush1.msra.mxu0 %v431
    %584 = vmatprep.subr.mxu0 0.0
    %585 = vmatpush1.msra.mxu0 %v432
    %586 = vmatprep.subr.mxu0 0.0
    %587 = vmatpush1.msra.mxu0 0.0
    %588 = vmatprep.subr.mxu0 0.0
    %589 = vmatpush1.msra.mxu0 0.0
    %590 = vmatprep.subr.mxu0 0.0
    %591 = vmatpush1.msra.mxu0 0.0
    %592 = vmatprep.subr.mxu0 0.0
    %593 = vmatpush1.msra.mxu0 0.0
    %594 = vmatprep.subr.mxu0 0.0
    %595 = vmatpush1.msra.mxu0 0.0
    %596 = vmatprep.subr.mxu0 0.0
    %597 = vmatpush1.msra.mxu0 0.0
    %598 = vmatprep.subr.mxu0 0.0
    %599 = vmatpush1.msra.mxu0 0.0
    %600 = vmatprep.subr.mxu0 0.0
    %601 = vmatpush1.msra.mxu0 0.0
    %602 = vmatprep.subr.mxu0 0.0
    %603 = vmatpush1.msra.mxu0 0.0
    %604 = vmatprep.subr.mxu0 0.0
    %605 = vmatpush1.msra.mxu0 0.0
    %606 = vmatprep.subr.mxu0 0.0
    %607 = vmatpush1.msra.mxu0 0.0
    %608 = vmatprep.subr.mxu0 0.0
    %609 = vmatpush1.msra.mxu0 0.0
    %610 = vmatprep.subr.mxu0 0.0
    %611 = vmatpush1.msra.mxu0 0.0
    %612 = vmatprep.subr.mxu0 0.0
    %613 = vmatpush1.msra.mxu0 0.0
    %614 = vmatprep.subr.mxu0 0.0
    %615 = vmatpush1.msra.mxu0 0.0
    %616 = vmatprep.subr.mxu0 0.0
    %617 = vmatpush1.msra.mxu0 0.0
    %618 = vmatprep.subr.mxu0 0.0
    %619 = vmatpush1.msra.mxu0 0.0
    %620 = vmatprep.subr.mxu0 0.0
    %621 = vmatpush1.msra.mxu0 0.0
    %622 = vmatprep.subr.mxu0 0.0
    %623 = vmatpush1.msra.mxu0 0.0
    %624 = vmatprep.subr.mxu0 0.0
    %625 = vmatpush1.msra.mxu0 0.0
    %626 = vmatprep.subr.mxu0 0.0
    %627 = vmatpush1.msra.mxu0 0.0
    %628 = vmatprep.subr.mxu0 0.0
    %629 = vmatpush1.msra.mxu0 0.0
    %630 = vmatprep.subr.mxu0 0.0
    %631 = vmatpush1.msra.mxu0 0.0
    %632 = vmatprep.mubr.f32.mxu0 0.0
    %633 = vmatmul.mubr.f32.gmra.mrb[0].mxu0 %v558
    %v634 = vpop.f32.mrb[0].mxu0
    %v635 = vadd.f32 %v535, %v634
    %v636 = vpop.f32.mrb[0].mxu0
    %637 = vmatprep.mubr.f32.mxu0 0.0
    %638 = vmatmul.mubr.f32.gmra.mrb[0].mxu0 %v560
    %v639 = vpop.f32.mrb[0].mxu0
    %v640 = vadd.f32 %v540, %v639
    %v641 = vpop.f32.mrb[0].mxu0
    %642 = vmatprep.mubr.f32.mxu0 0.0
    %643 = vmatmul.mubr.f32.gmra.mrb[0].mxu0 %v562
    %v644 = vpop.f32.mrb[0].mxu0
    %v645 = vadd.f32 %v545, %v644
    %v646 = vpop.f32.mrb[0].mxu0
    %647 = vmatprep.mubr.f32.mxu0 0.0
    %648 = vmatmul.mubr.f32.gmra.mrb[0].mxu0 %v564
    %v649 = vpop.f32.mrb[0].mxu0
    %v650 = vadd.f32 %v550, %v649
    %v651 = vpop.f32.mrb[0].mxu0
    %652 = vmatprep.mubr.f32.mxu0 0.0
    %653 = vmatmul.mubr.f32.gmra.mrb[0].mxu0 %v566
    %v654 = vpop.f32.mrb[0].mxu0
    %v655 = vadd.f32 %v555, %v654
    %v656 = vpop.f32.mrb[0].mxu0
    %657 = vdwg.mxu0
    %s658 = scalar_lea.vmem [#allocation8], 144
    %v659 = vld [vmem:[%s658] sm:$0xff]
    %v660 = vld [vmem:[%s658 + $0x8] sm:$0xff]
    %v661 = vld [vmem:[%s658 + $0x10] sm:$0xff]
    %v662 = vld [vmem:[%s658 + $0x18] sm:$0xff]
    %v663 = vld [vmem:[%s658 + $0x20] sm:$0xff]
    %v664 = vld [vmem:[%s658 + $0x28] sm:$0xff]
    %v665 = vld [vmem:[%s658 + $0x30] sm:$0xff]
    %v666 = vld [vmem:[%s658 + $0x38] sm:$0xff]
    %v667 = vld [vmem:[%s658 + $0x40] sm:$0xff]
    %vm668 = vcmask 1045504
    %v669 = vrot.slane %v419, 2
    %v670 = vrot.slane %v420, 2
    %v671 = vsel %vm668, %v669, %v670
    %v672 = vrot.slane %v421, 2
    %v673 = vsel %vm668, %v670, %v672
    %v674 = vrot.slane %v422, 2
    %v675 = vsel %vm668, %v672, %v674
    %v676 = vrot.slane %v423, 2
    %v677 = vsel %vm668, %v674, %v676
    %v678 = vsel %vm127, %v671, 0
    %v680 = vsel %vm127, %v673, 0
    %v682 = vsel %vm127, %v675, 0
    %v684 = vsel %vm127, %v677, 0
    %v686 = vsel %vm127, %v676, 0
    %688 = vmatprep.subr.mxu0 0.0
    %689 = vmatpush1.msra.mxu0 %v659
    %690 = vmatprep.subr.mxu0 0.0
    %691 = vmatpush1.msra.mxu0 %v660
    %692 = vmatprep.subr.mxu0 0.0
    %693 = vmatpush1.msra.mxu0 %v661
    %694 = vmatprep.subr.mxu0 0.0
    %695 = vmatpush1.msra.mxu0 %v662
    %696 = vmatprep.subr.mxu0 0.0
    %697 = vmatpush1.msra.mxu0 %v663
    %698 = vmatprep.subr.mxu0 0.0
    %699 = vmatpush1.msra.mxu0 %v664
    %700 = vmatprep.subr.mxu0 0.0
    %701 = vmatpush1.msra.mxu0 %v665
    %702 = vmatprep.subr.mxu0 0.0
    %703 = vmatpush1.msra.mxu0 %v666
    %704 = vmatprep.subr.mxu0 0.0
    %705 = vmatpush1.msra.mxu0 %v667
    %706 = vmatprep.subr.mxu0 0.0
    %707 = vmatpush1.msra.mxu0 0.0
    %708 = vmatprep.subr.mxu0 0.0
    %709 = vmatpush1.msra.mxu0 0.0
    %710 = vmatprep.subr.mxu0 0.0
    %711 = vmatpush1.msra.mxu0 0.0
    %712 = vmatprep.subr.mxu0 0.0
    %713 = vmatpush1.msra.mxu0 0.0
    %714 = vmatprep.subr.mxu0 0.0
    %715 = vmatpush1.msra.mxu0 0.0
    %716 = vmatprep.subr.mxu0 0.0
    %717 = vmatpush1.msra.mxu0 0.0
    %718 = vmatprep.subr.mxu0 0.0
    %719 = vmatpush1.msra.mxu0 0.0
    %720 = vmatprep.subr.mxu0 0.0
    %721 = vmatpush1.msra.mxu0 0.0
    %722 = vmatprep.subr.mxu0 0.0
    %723 = vmatpush1.msra.mxu0 0.0
    %724 = vmatprep.subr.mxu0 0.0
    %725 = vmatpush1.msra.mxu0 0.0
    %726 = vmatprep.subr.mxu0 0.0
    %727 = vmatpush1.msra.mxu0 0.0
    %728 = vmatprep.subr.mxu0 0.0
    %729 = vmatpush1.msra.mxu0 0.0
    %730 = vmatprep.subr.mxu0 0.0
    %731 = vmatpush1.msra.mxu0 0.0
    %732 = vmatprep.subr.mxu0 0.0
    %733 = vmatpush1.msra.mxu0 0.0
    %734 = vmatprep.subr.mxu0 0.0
    %735 = vmatpush1.msra.mxu0 0.0
    %736 = vmatprep.subr.mxu0 0.0
    %737 = vmatpush1.msra.mxu0 0.0
    %738 = vmatprep.subr.mxu0 0.0
    %739 = vmatpush1.msra.mxu0 0.0
    %740 = vmatprep.subr.mxu0 0.0
    %741 = vmatpush1.msra.mxu0 0.0
    %742 = vmatprep.subr.mxu0 0.0
    %743 = vmatpush1.msra.mxu0 0.0
    %744 = vmatprep.subr.mxu0 0.0
    %745 = vmatpush1.msra.mxu0 0.0
    %746 = vmatprep.subr.mxu0 0.0
    %747 = vmatpush1.msra.mxu0 0.0
    %748 = vmatprep.subr.mxu0 0.0
    %749 = vmatpush1.msra.mxu0 0.0
    %750 = vmatprep.subr.mxu0 0.0
    %751 = vmatpush1.msra.mxu0 0.0
    %752 = vmatprep.mubr.f32.mxu0 0.0
    %753 = vmatmul.mubr.f32.gmra.mrb[0].mxu0 %v678
    %v754 = vpop.f32.mrb[0].mxu0
    %v755 = vadd.f32 0.0, %v754
    %v756 = vpop.f32.mrb[0].mxu0
    %757 = vmatprep.mubr.f32.mxu0 0.0
    %758 = vmatmul.mubr.f32.gmra.mrb[0].mxu0 %v680
    %v759 = vpop.f32.mrb[0].mxu0
    %v760 = vadd.f32 0.0, %v759
    %v761 = vpop.f32.mrb[0].mxu0
    %762 = vmatprep.mubr.f32.mxu0 0.0
    %763 = vmatmul.mubr.f32.gmra.mrb[0].mxu0 %v682
    %v764 = vpop.f32.mrb[0].mxu0
    %v765 = vadd.f32 0.0, %v764
    %v766 = vpop.f32.mrb[0].mxu0
    %767 = vmatprep.mubr.f32.mxu0 0.0
    %768 = vmatmul.mubr.f32.gmra.mrb[0].mxu0 %v684
    %v769 = vpop.f32.mrb[0].mxu0
    %v770 = vadd.f32 0.0, %v769
    %v771 = vpop.f32.mrb[0].mxu0
    %772 = vmatprep.mubr.f32.mxu0 0.0
    %773 = vmatmul.mubr.f32.gmra.mrb[0].mxu0 %v686
    %v774 = vpop.f32.mrb[0].mxu0
    %v775 = vadd.f32 0.0, %v774
    %v776 = vpop.f32.mrb[0].mxu0
    %777 = vdwg.mxu0
    %v778 = vadd.f32 %v635, %v755
    %v779 = vadd.f32 %v640, %v760
    %v780 = vadd.f32 %v645, %v765
    %v781 = vadd.f32 %v650, %v770
    %v782 = vadd.f32 %v655, %v775
    %v783 = vld [vmem:[%s6] sm:$0x1]
    %v784 = vld [vmem:[%s7] sm:$0x1]
    %v790 = vrot.slane %v110, 1
    %v791 = vrot.slane %v111, 1
    %v792 = vsel %vm448, %v790, %v791
    %v793 = vrot.slane %v112, 1
    %v794 = vsel %vm448, %v791, %v793
    %v795 = vrot.slane %v113, 1
    %v796 = vsel %vm448, %v793, %v795
    %v797 = vrot.slane %v114, 1
    %v798 = vsel %vm448, %v795, %v797
    %v804 = vmul.f32 %v778, %v792
    %v805 = vmul.f32 %v779, %v794
    %v806 = vmul.f32 %v780, %v796
    %v807 = vmul.f32 %v781, %v798
    %v808 = vmul.f32 %v782, %v797
    %v810 = vsel %vm127, %v804, 0
    %v813 = vsel %vm127, %v805, 0
    %v816 = vsel %vm127, %v806, 0
    %v819 = vsel %vm127, %v807, 0
    %v822 = vsel %vm127, %v808, 0
    %824 = vmatprep.subr.mxu0 0.0
    %825 = vmatpush1.msra.mxu0 %v101
    %826 = vmatprep.subr.mxu0 0.0
    %827 = vmatpush1.msra.mxu0 %v102
    %828 = vmatprep.subr.mxu0 0.0
    %829 = vmatpush1.msra.mxu0 %v103
    %830 = vmatprep.subr.mxu0 0.0
    %831 = vmatpush1.msra.mxu0 %v104
    %832 = vmatprep.subr.mxu0 0.0
    %833 = vmatpush1.msra.mxu0 %v105
    %834 = vmatprep.subr.mxu0 0.0
    %835 = vmatpush1.msra.mxu0 %v106
    %836 = vmatprep.subr.mxu0 0.0
    %837 = vmatpush1.msra.mxu0 %v107
    %838 = vmatprep.subr.mxu0 0.0
    %839 = vmatpush1.msra.mxu0 %v108
    %840 = vmatprep.subr.mxu0 0.0
    %841 = vmatpush1.msra.mxu0 %v109
    %842 = vmatprep.subr.mxu0 0.0
    %843 = vmatpush1.msra.mxu0 0.0
    %844 = vmatprep.subr.mxu0 0.0
    %845 = vmatpush1.msra.mxu0 0.0
    %846 = vmatprep.subr.mxu0 0.0
    %847 = vmatpush1.msra.mxu0 0.0
    %848 = vmatprep.subr.mxu0 0.0
    %849 = vmatpush1.msra.mxu0 0.0
    %850 = vmatprep.subr.mxu0 0.0
    %851 = vmatpush1.msra.mxu0 0.0
    %852 = vmatprep.subr.mxu0 0.0
    %853 = vmatpush1.msra.mxu0 0.0
    %854 = vmatprep.subr.mxu0 0.0
    %855 = vmatpush1.msra.mxu0 0.0
    %856 = vmatprep.subr.mxu0 0.0
    %857 = vmatpush1.msra.mxu0 0.0
    %858 = vmatprep.subr.mxu0 0.0
    %859 = vmatpush1.msra.mxu0 0.0
    %860 = vmatprep.subr.mxu0 0.0
    %861 = vmatpush1.msra.mxu0 0.0
    %862 = vmatprep.subr.mxu0 0.0
    %863 = vmatpush1.msra.mxu0 0.0
    %864 = vmatprep.subr.mxu0 0.0
    %865 = vmatpush1.msra.mxu0 0.0
    %866 = vmatprep.subr.mxu0 0.0
    %867 = vmatpush1.msra.mxu0 0.0
    %868 = vmatprep.subr.mxu0 0.0
    %869 = vmatpush1.msra.mxu0 0.0
    %870 = vmatprep.subr.mxu0 0.0
    %871 = vmatpush1.msra.mxu0 0.0
    %872 = vmatprep.subr.mxu0 0.0
    %873 = vmatpush1.msra.mxu0 0.0
    %874 = vmatprep.subr.mxu0 0.0
    %875 = vmatpush1.msra.mxu0 0.0
    %876 = vmatprep.subr.mxu0 0.0
    %877 = vmatpush1.msra.mxu0 0.0
    %878 = vmatprep.subr.mxu0 0.0
    %879 = vmatpush1.msra.mxu0 0.0
    %880 = vmatprep.subr.mxu0 0.0
    %881 = vmatpush1.msra.mxu0 0.0
    %882 = vmatprep.subr.mxu0 0.0
    %883 = vmatpush1.msra.mxu0 0.0
    %884 = vmatprep.subr.mxu0 0.0
    %885 = vmatpush1.msra.mxu0 0.0
    %886 = vmatprep.subr.mxu0 0.0
    %887 = vmatpush1.msra.mxu0 0.0
    %888 = vmatprep.mubr.f32.mxu0 0.0
    %889 = vmatmul.mubr.f32.gmra.mrb[0].mxu0 %v810
    %v890 = vpop.f32.mrb[0].mxu0
    %v891 = vadd.f32 0.0, %v890
    %v892 = vpop.f32.mrb[0].mxu0
    %893 = vmatprep.mubr.f32.mxu0 0.0
    %894 = vmatmul.mubr.f32.gmra.mrb[0].mxu0 %v813
    %v895 = vpop.f32.mrb[0].mxu0
    %v896 = vadd.f32 0.0, %v895
    %v897 = vpop.f32.mrb[0].mxu0
    %898 = vmatprep.mubr.f32.mxu0 0.0
    %899 = vmatmul.mubr.f32.gmra.mrb[0].mxu0 %v816
    %v900 = vpop.f32.mrb[0].mxu0
    %v901 = vadd.f32 0.0, %v900
    %v902 = vpop.f32.mrb[0].mxu0
    %903 = vmatprep.mubr.f32.mxu0 0.0
    %904 = vmatmul.mubr.f32.gmra.mrb[0].mxu0 %v819
    %v905 = vpop.f32.mrb[0].mxu0
    %v906 = vadd.f32 0.0, %v905
    %v907 = vpop.f32.mrb[0].mxu0
    %908 = vmatprep.mubr.f32.mxu0 0.0
    %909 = vmatmul.mubr.f32.gmra.mrb[0].mxu0 %v822
    %v910 = vpop.f32.mrb[0].mxu0
    %v911 = vadd.f32 0.0, %v910
    %v912 = vpop.f32.mrb[0].mxu0
    %913 = vdwg.mxu0
    %v914 = vsel %vm127, %v891, 0.0
    %v915 = vsel %vm127, %v896, 0.0
    %v916 = vadd.f32 %v914, %v915
    %v917 = vsel %vm127, %v901, 0.0
    %v918 = vadd.f32 %v916, %v917
    %v919 = vsel %vm127, %v906, 0.0
    %v920 = vadd.f32 %v918, %v919
    %vm921 = vcmask 586752
    %v922 = vsel %vm921, %v911, 0.0
    %v923 = vadd.f32 %v920, %v922
    %v924 = vrot.slane %v923, 4
    %v925 = vadd.f32 %v923, %v924
    %v926 = vrot.slane %v925, 2
    %v927 = vadd.f32 %v925, %v926
    %v928 = vrot.slane %v927, 1
    %v929 = vadd.f32 %v927, %v928
    %v930 = vmul.f32 %v804, %v804
    %v931 = vmul.f32 %v805, %v805
    %v932 = vmul.f32 %v806, %v806
    %v933 = vmul.f32 %v807, %v807
    %v934 = vmul.f32 %v808, %v808
    %v936 = vsel %vm127, %v930, 0
    %v939 = vsel %vm127, %v931, 0
    %v942 = vsel %vm127, %v932, 0
    %v945 = vsel %vm127, %v933, 0
    %v948 = vsel %vm127, %v934, 0
    %950 = vmatprep.subr.mxu0 0.0
    %951 = vmatpush1.msra.mxu0 %v101
    %952 = vmatprep.subr.mxu0 0.0
    %953 = vmatpush1.msra.mxu0 %v102
    %954 = vmatprep.subr.mxu0 0.0
    %955 = vmatpush1.msra.mxu0 %v103
    %956 = vmatprep.subr.mxu0 0.0
    %957 = vmatpush1.msra.mxu0 %v104
    %958 = vmatprep.subr.mxu0 0.0
    %959 = vmatpush1.msra.mxu0 %v105
    %960 = vmatprep.subr.mxu0 0.0
    %961 = vmatpush1.msra.mxu0 %v106
    %962 = vmatprep.subr.mxu0 0.0
    %963 = vmatpush1.msra.mxu0 %v107
    %964 = vmatprep.subr.mxu0 0.0
    %965 = vmatpush1.msra.mxu0 %v108
    %966 = vmatprep.subr.mxu0 0.0
    %967 = vmatpush1.msra.mxu0 %v109
    %968 = vmatprep.subr.mxu0 0.0
    %969 = vmatpush1.msra.mxu0 0.0
    %970 = vmatprep.subr.mxu0 0.0
    %971 = vmatpush1.msra.mxu0 0.0
    %972 = vmatprep.subr.mxu0 0.0
    %973 = vmatpush1.msra.mxu0 0.0
    %974 = vmatprep.subr.mxu0 0.0
    %975 = vmatpush1.msra.mxu0 0.0
    %976 = vmatprep.subr.mxu0 0.0
    %977 = vmatpush1.msra.mxu0 0.0
    %978 = vmatprep.subr.mxu0 0.0
    %979 = vmatpush1.msra.mxu0 0.0
    %980 = vmatprep.subr.mxu0 0.0
    %981 = vmatpush1.msra.mxu0 0.0
    %982 = vmatprep.subr.mxu0 0.0
    %983 = vmatpush1.msra.mxu0 0.0
    %984 = vmatprep.subr.mxu0 0.0
    %985 = vmatpush1.msra.mxu0 0.0
    %986 = vmatprep.subr.mxu0 0.0
    %987 = vmatpush1.msra.mxu0 0.0
    %988 = vmatprep.subr.mxu0 0.0
    %989 = vmatpush1.msra.mxu0 0.0
    %990 = vmatprep.subr.mxu0 0.0
    %991 = vmatpush1.msra.mxu0 0.0
    %992 = vmatprep.subr.mxu0 0.0
    %993 = vmatpush1.msra.mxu0 0.0
    %994 = vmatprep.subr.mxu0 0.0
    %995 = vmatpush1.msra.mxu0 0.0
    %996 = vmatprep.subr.mxu0 0.0
    %997 = vmatpush1.msra.mxu0 0.0
    %998 = vmatprep.subr.mxu0 0.0
    %999 = vmatpush1.msra.mxu0 0.0
    %1000 = vmatprep.subr.mxu0 0.0
    %1001 = vmatpush1.msra.mxu0 0.0
    %1002 = vmatprep.subr.mxu0 0.0
    %1003 = vmatpush1.msra.mxu0 0.0
    %1004 = vmatprep.subr.mxu0 0.0
    %1005 = vmatpush1.msra.mxu0 0.0
    %1006 = vmatprep.subr.mxu0 0.0
    %1007 = vmatpush1.msra.mxu0 0.0
    %1008 = vmatprep.subr.mxu0 0.0
    %1009 = vmatpush1.msra.mxu0 0.0
    %1010 = vmatprep.subr.mxu0 0.0
    %1011 = vmatpush1.msra.mxu0 0.0
    %1012 = vmatprep.subr.mxu0 0.0
    %1013 = vmatpush1.msra.mxu0 0.0
    %1014 = vmatprep.mubr.f32.mxu0 0.0
    %1015 = vmatmul.mubr.f32.gmra.mrb[0].mxu0 %v936
    %v1016 = vpop.f32.mrb[0].mxu0
    %v1017 = vadd.f32 0.0, %v1016
    %v1018 = vpop.f32.mrb[0].mxu0
    %1019 = vmatprep.mubr.f32.mxu0 0.0
    %1020 = vmatmul.mubr.f32.gmra.mrb[0].mxu0 %v939
    %v1021 = vpop.f32.mrb[0].mxu0
    %v1022 = vadd.f32 0.0, %v1021
    %v1023 = vpop.f32.mrb[0].mxu0
    %1024 = vmatprep.mubr.f32.mxu0 0.0
    %1025 = vmatmul.mubr.f32.gmra.mrb[0].mxu0 %v942
    %v1026 = vpop.f32.mrb[0].mxu0
    %v1027 = vadd.f32 0.0, %v1026
    %v1028 = vpop.f32.mrb[0].mxu0
    %1029 = vmatprep.mubr.f32.mxu0 0.0
    %1030 = vmatmul.mubr.f32.gmra.mrb[0].mxu0 %v945
    %v1031 = vpop.f32.mrb[0].mxu0
    %v1032 = vadd.f32 0.0, %v1031
    %v1033 = vpop.f32.mrb[0].mxu0
    %1034 = vmatprep.mubr.f32.mxu0 0.0
    %1035 = vmatmul.mubr.f32.gmra.mrb[0].mxu0 %v948
    %v1036 = vpop.f32.mrb[0].mxu0
    %v1037 = vadd.f32 0.0, %v1036
    %v1038 = vpop.f32.mrb[0].mxu0
    %1039 = vdwg.mxu0
    %v1040 = vsel %vm127, %v1017, 0.0
    %v1041 = vsel %vm127, %v1022, 0.0
    %v1042 = vadd.f32 %v1040, %v1041
    %v1043 = vsel %vm127, %v1027, 0.0
    %v1044 = vadd.f32 %v1042, %v1043
    %v1045 = vsel %vm127, %v1032, 0.0
    %v1046 = vadd.f32 %v1044, %v1045
    %v1047 = vsel %vm921, %v1037, 0.0
    %v1048 = vadd.f32 %v1046, %v1047
    %v1049 = vrot.slane %v1048, 4
    %v1050 = vadd.f32 %v1048, %v1049
    %v1051 = vrot.slane %v1050, 2
    %v1052 = vadd.f32 %v1050, %v1051
    %v1053 = vrot.slane %v1052, 1
    %v1054 = vadd.f32 %v1052, %v1053
    %v1055 = vmul.f32 %v929, 0.001953125
    %v1056 = vmul.f32 %v1054, 0.001953125
    %v1057 = vmul.f32 %v1055, %v1055
    %v1058 = vsub.f32 %v1056, %v1057
    %v1059 = vadd.f32 %v1058, 1e-05
    %v1060 = vrsqrt.pop %v1059
    %v1061 = vmul.f32 %v783, %v1060
    %v1062 = vmul.f32 %v1055, %v1061
    %v1063 = vsub.f32 %v784, %v1062
    %v1065 = vlaneseq
    %v1066 = vshrl.u32 %v1065, 7
    %v1067 = vsub.s32 0, %v1066
    %v1068 = vrot.slane %v1061, %v1067
    %v1070 = vmul.f32 %v804, %v1068
    %v1071 = vmul.f32 %v805, %v1068
    %v1072 = vmul.f32 %v806, %v1068
    %v1073 = vmul.f32 %v807, %v1068
    %v1074 = vmul.f32 %v808, %v1068
    %v1076 = vlaneseq
    %v1077 = vshrl.u32 %v1076, 7
    %v1078 = vsub.s32 0, %v1077
    %v1079 = vrot.slane %v1063, %v1078
    %v1081 = vadd.f32 %v1070, %v1079
    %v1082 = vadd.f32 %v1071, %v1079
    %v1083 = vadd.f32 %v1072, %v1079
    %v1084 = vadd.f32 %v1073, %v1079
    %v1085 = vadd.f32 %v1074, %v1079
    %vm1086 = vcmp.ge.f32.partialorder %v1081, 0.0
    %vm1087 = vcmp.ge.f32.partialorder %v1082, 0.0
    %vm1088 = vcmp.ge.f32.partialorder %v1083, 0.0
    %vm1089 = vcmp.ge.f32.partialorder %v1084, 0.0
    %vm1090 = vcmp.ge.f32.partialorder %v1085, 0.0
    %v1091 = vmul.f32 %v1081, 0.01
    %v1092 = vmul.f32 %v1082, 0.01
    %v1093 = vmul.f32 %v1083, 0.01
    %v1094 = vmul.f32 %v1084, 0.01
    %v1095 = vmul.f32 %v1085, 0.01
    %v1096 = vsel %vm1086, %v1081, %v1091
    %v1097 = vsel %vm1087, %v1082, %v1092
    %v1098 = vsel %vm1088, %v1083, %v1093
    %v1099 = vsel %vm1089, %v1084, %v1094
    %v1100 = vsel %vm1090, %v1085, %v1095
    %v1101 = vmul.f32 %v1096, %v792
    %v1102 = vmul.f32 %v1097, %v794
    %v1103 = vmul.f32 %v1098, %v796
    %v1104 = vmul.f32 %v1099, %v798
    %v1105 = vmul.f32 %v1100, %v797
    %v1106 = vld [vmem:[#allocation10] sm:$0xff]
    %v1107 = vld [vmem:[#allocation10 + $0x8] sm:$0xff]
    %v1108 = vld [vmem:[#allocation10 + $0x10] sm:$0xff]
    %v1109 = vld [vmem:[#allocation10 + $0x18] sm:$0xff]
    %v1110 = vld [vmem:[#allocation10 + $0x20] sm:$0xff]
    %v1111 = vld [vmem:[#allocation10 + $0x28] sm:$0xff]
    %v1112 = vld [vmem:[#allocation10 + $0x30] sm:$0xff]
    %v1113 = vld [vmem:[#allocation10 + $0x38] sm:$0xff]
    %v1114 = vld [vmem:[#allocation10 + $0x40] sm:$0xff]
    %s1115 = scalar_lea.vmem [#allocation10], 72
    %v1116 = vld [vmem:[%s1115] sm:$0xff]
    %v1117 = vld [vmem:[%s1115 + $0x8] sm:$0xff]
    %v1118 = vld [vmem:[%s1115 + $0x10] sm:$0xff]
    %v1119 = vld [vmem:[%s1115 + $0x18] sm:$0xff]
    %v1120 = vld [vmem:[%s1115 + $0x20] sm:$0xff]
    %v1121 = vld [vmem:[%s1115 + $0x28] sm:$0xff]
    %v1122 = vld [vmem:[%s1115 + $0x30] sm:$0xff]
    %v1123 = vld [vmem:[%s1115 + $0x38] sm:$0xff]
    %v1124 = vld [vmem:[%s1115 + $0x40] sm:$0xff]
    %v1130 = vrot.slane %v1101, 1
    %v1131 = vrot.slane %v1102, 1
    %v1132 = vsel %vm448, %v1130, %v1131
    %v1133 = vrot.slane %v1103, 1
    %v1134 = vsel %vm448, %v1131, %v1133
    %v1135 = vrot.slane %v1104, 1
    %v1136 = vsel %vm448, %v1133, %v1135
    %v1137 = vrot.slane %v1105, 1
    %v1138 = vsel %vm448, %v1135, %v1137
    %v1139 = vsel %vm127, %v1132, 0
    %v1141 = vsel %vm127, %v1134, 0
    %v1143 = vsel %vm127, %v1136, 0
    %v1145 = vsel %vm127, %v1138, 0
    %v1147 = vsel %vm127, %v1137, 0
    %1149 = vmatprep.subr.mxu0 0.0
    %1150 = vmatpush1.msra.mxu0 %v1116
    %1151 = vmatprep.subr.mxu0 0.0
    %1152 = vmatpush1.msra.mxu0 %v1117
    %1153 = vmatprep.subr.mxu0 0.0
    %1154 = vmatpush1.msra.mxu0 %v1118
    %1155 = vmatprep.subr.mxu0 0.0
    %1156 = vmatpush1.msra.mxu0 %v1119
    %1157 = vmatprep.subr.mxu0 0.0
    %1158 = vmatpush1.msra.mxu0 %v1120
    %1159 = vmatprep.subr.mxu0 0.0
    %1160 = vmatpush1.msra.mxu0 %v1121
    %1161 = vmatprep.subr.mxu0 0.0
    %1162 = vmatpush1.msra.mxu0 %v1122
    %1163 = vmatprep.subr.mxu0 0.0
    %1164 = vmatpush1.msra.mxu0 %v1123
    %1165 = vmatprep.subr.mxu0 0.0
    %1166 = vmatpush1.msra.mxu0 %v1124
    %1167 = vmatprep.subr.mxu0 0.0
    %1168 = vmatpush1.msra.mxu0 0.0
    %1169 = vmatprep.subr.mxu0 0.0
    %1170 = vmatpush1.msra.mxu0 0.0
    %1171 = vmatprep.subr.mxu0 0.0
    %1172 = vmatpush1.msra.mxu0 0.0
    %1173 = vmatprep.subr.mxu0 0.0
    %1174 = vmatpush1.msra.mxu0 0.0
    %1175 = vmatprep.subr.mxu0 0.0
    %1176 = vmatpush1.msra.mxu0 0.0
    %1177 = vmatprep.subr.mxu0 0.0
    %1178 = vmatpush1.msra.mxu0 0.0
    %1179 = vmatprep.subr.mxu0 0.0
    %1180 = vmatpush1.msra.mxu0 0.0
    %1181 = vmatprep.subr.mxu0 0.0
    %1182 = vmatpush1.msra.mxu0 0.0
    %1183 = vmatprep.subr.mxu0 0.0
    %1184 = vmatpush1.msra.mxu0 0.0
    %1185 = vmatprep.subr.mxu0 0.0
    %1186 = vmatpush1.msra.mxu0 0.0
    %1187 = vmatprep.subr.mxu0 0.0
    %1188 = vmatpush1.msra.mxu0 0.0
    %1189 = vmatprep.subr.mxu0 0.0
    %1190 = vmatpush1.msra.mxu0 0.0
    %1191 = vmatprep.subr.mxu0 0.0
    %1192 = vmatpush1.msra.mxu0 0.0
    %1193 = vmatprep.subr.mxu0 0.0
    %1194 = vmatpush1.msra.mxu0 0.0
    %1195 = vmatprep.subr.mxu0 0.0
    %1196 = vmatpush1.msra.mxu0 0.0
    %1197 = vmatprep.subr.mxu0 0.0
    %1198 = vmatpush1.msra.mxu0 0.0
    %1199 = vmatprep.subr.mxu0 0.0
    %1200 = vmatpush1.msra.mxu0 0.0
    %1201 = vmatprep.subr.mxu0 0.0
    %1202 = vmatpush1.msra.mxu0 0.0
    %1203 = vmatprep.subr.mxu0 0.0
    %1204 = vmatpush1.msra.mxu0 0.0
    %1205 = vmatprep.subr.mxu0 0.0
    %1206 = vmatpush1.msra.mxu0 0.0
    %1207 = vmatprep.subr.mxu0 0.0
    %1208 = vmatpush1.msra.mxu0 0.0
    %1209 = vmatprep.subr.mxu0 0.0
    %1210 = vmatpush1.msra.mxu0 0.0
    %1211 = vmatprep.subr.mxu0 0.0
    %1212 = vmatpush1.msra.mxu0 0.0
    %1213 = vmatprep.mubr.f32.mxu0 0.0
    %1214 = vmatmul.mubr.f32.gmra.mrb[0].mxu0 %v1139
    %v1215 = vpop.f32.mrb[0].mxu0
    %v1216 = vadd.f32 0.0, %v1215
    %v1217 = vpop.f32.mrb[0].mxu0
    %1218 = vmatprep.mubr.f32.mxu0 0.0
    %1219 = vmatmul.mubr.f32.gmra.mrb[0].mxu0 %v1141
    %v1220 = vpop.f32.mrb[0].mxu0
    %v1221 = vadd.f32 0.0, %v1220
    %v1222 = vpop.f32.mrb[0].mxu0
    %1223 = vmatprep.mubr.f32.mxu0 0.0
    %1224 = vmatmul.mubr.f32.gmra.mrb[0].mxu0 %v1143
    %v1225 = vpop.f32.mrb[0].mxu0
    %v1226 = vadd.f32 0.0, %v1225
    %v1227 = vpop.f32.mrb[0].mxu0
    %1228 = vmatprep.mubr.f32.mxu0 0.0
    %1229 = vmatmul.mubr.f32.gmra.mrb[0].mxu0 %v1145
    %v1230 = vpop.f32.mrb[0].mxu0
    %v1231 = vadd.f32 0.0, %v1230
    %v1232 = vpop.f32.mrb[0].mxu0
    %1233 = vmatprep.mubr.f32.mxu0 0.0
    %1234 = vmatmul.mubr.f32.gmra.mrb[0].mxu0 %v1147
    %v1235 = vpop.f32.mrb[0].mxu0
    %v1236 = vadd.f32 0.0, %v1235
    %v1237 = vpop.f32.mrb[0].mxu0
    %1238 = vdwg.mxu0
    %v1239 = vsel %vm127, %v1101, 0
    %v1241 = vsel %vm127, %v1102, 0
    %v1243 = vsel %vm127, %v1103, 0
    %v1245 = vsel %vm127, %v1104, 0
    %v1247 = vsel %vm127, %v1105, 0
    %1249 = vmatprep.subr.mxu0 0.0
    %1250 = vmatpush1.msra.mxu0 %v1106
    %1251 = vmatprep.subr.mxu0 0.0
    %1252 = vmatpush1.msra.mxu0 %v1107
    %1253 = vmatprep.subr.mxu0 0.0
    %1254 = vmatpush1.msra.mxu0 %v1108
    %1255 = vmatprep.subr.mxu0 0.0
    %1256 = vmatpush1.msra.mxu0 %v1109
    %1257 = vmatprep.subr.mxu0 0.0
    %1258 = vmatpush1.msra.mxu0 %v1110
    %1259 = vmatprep.subr.mxu0 0.0
    %1260 = vmatpush1.msra.mxu0 %v1111
    %1261 = vmatprep.subr.mxu0 0.0
    %1262 = vmatpush1.msra.mxu0 %v1112
    %1263 = vmatprep.subr.mxu0 0.0
    %1264 = vmatpush1.msra.mxu0 %v1113
    %1265 = vmatprep.subr.mxu0 0.0
    %1266 = vmatpush1.msra.mxu0 %v1114
    %1267 = vmatprep.subr.mxu0 0.0
    %1268 = vmatpush1.msra.mxu0 0.0
    %1269 = vmatprep.subr.mxu0 0.0
    %1270 = vmatpush1.msra.mxu0 0.0
    %1271 = vmatprep.subr.mxu0 0.0
    %1272 = vmatpush1.msra.mxu0 0.0
    %1273 = vmatprep.subr.mxu0 0.0
    %1274 = vmatpush1.msra.mxu0 0.0
    %1275 = vmatprep.subr.mxu0 0.0
    %1276 = vmatpush1.msra.mxu0 0.0
    %1277 = vmatprep.subr.mxu0 0.0
    %1278 = vmatpush1.msra.mxu0 0.0
    %1279 = vmatprep.subr.mxu0 0.0
    %1280 = vmatpush1.msra.mxu0 0.0
    %1281 = vmatprep.subr.mxu0 0.0
    %1282 = vmatpush1.msra.mxu0 0.0
    %1283 = vmatprep.subr.mxu0 0.0
    %1284 = vmatpush1.msra.mxu0 0.0
    %1285 = vmatprep.subr.mxu0 0.0
    %1286 = vmatpush1.msra.mxu0 0.0
    %1287 = vmatprep.subr.mxu0 0.0
    %1288 = vmatpush1.msra.mxu0 0.0
    %1289 = vmatprep.subr.mxu0 0.0
    %1290 = vmatpush1.msra.mxu0 0.0
    %1291 = vmatprep.subr.mxu0 0.0
    %1292 = vmatpush1.msra.mxu0 0.0
    %1293 = vmatprep.subr.mxu0 0.0
    %1294 = vmatpush1.msra.mxu0 0.0
    %1295 = vmatprep.subr.mxu0 0.0
    %1296 = vmatpush1.msra.mxu0 0.0
    %1297 = vmatprep.subr.mxu0 0.0
    %1298 = vmatpush1.msra.mxu0 0.0
    %1299 = vmatprep.subr.mxu0 0.0
    %1300 = vmatpush1.msra.mxu0 0.0
    %1301 = vmatprep.subr.mxu0 0.0
    %1302 = vmatpush1.msra.mxu0 0.0
    %1303 = vmatprep.subr.mxu0 0.0
    %1304 = vmatpush1.msra.mxu0 0.0
    %1305 = vmatprep.subr.mxu0 0.0
    %1306 = vmatpush1.msra.mxu0 0.0
    %1307 = vmatprep.subr.mxu0 0.0
    %1308 = vmatpush1.msra.mxu0 0.0
    %1309 = vmatprep.subr.mxu0 0.0
    %1310 = vmatpush1.msra.mxu0 0.0
    %1311 = vmatprep.subr.mxu0 0.0
    %1312 = vmatpush1.msra.mxu0 0.0
    %1313 = vmatprep.mubr.f32.mxu0 0.0
    %1314 = vmatmul.mubr.f32.gmra.mrb[0].mxu0 %v1239
    %v1315 = vpop.f32.mrb[0].mxu0
    %v1316 = vadd.f32 %v1216, %v1315
    %v1317 = vpop.f32.mrb[0].mxu0
    %1318 = vmatprep.mubr.f32.mxu0 0.0
    %1319 = vmatmul.mubr.f32.gmra.mrb[0].mxu0 %v1241
    %v1320 = vpop.f32.mrb[0].mxu0
    %v1321 = vadd.f32 %v1221, %v1320
    %v1322 = vpop.f32.mrb[0].mxu0
    %1323 = vmatprep.mubr.f32.mxu0 0.0
    %1324 = vmatmul.mubr.f32.gmra.mrb[0].mxu0 %v1243
    %v1325 = vpop.f32.mrb[0].mxu0
    %v1326 = vadd.f32 %v1226, %v1325
    %v1327 = vpop.f32.mrb[0].mxu0
    %1328 = vmatprep.mubr.f32.mxu0 0.0
    %1329 = vmatmul.mubr.f32.gmra.mrb[0].mxu0 %v1245
    %v1330 = vpop.f32.mrb[0].mxu0
    %v1331 = vadd.f32 %v1231, %v1330
    %v1332 = vpop.f32.mrb[0].mxu0
    %1333 = vmatprep.mubr.f32.mxu0 0.0
    %1334 = vmatmul.mubr.f32.gmra.mrb[0].mxu0 %v1247
    %v1335 = vpop.f32.mrb[0].mxu0
    %v1336 = vadd.f32 %v1236, %v1335
    %v1337 = vpop.f32.mrb[0].mxu0
    %1338 = vdwg.mxu0
    %s1339 = scalar_lea.vmem [#allocation10], 144
    %v1340 = vld [vmem:[%s1339] sm:$0xff]
    %v1341 = vld [vmem:[%s1339 + $0x8] sm:$0xff]
    %v1342 = vld [vmem:[%s1339 + $0x10] sm:$0xff]
    %v1343 = vld [vmem:[%s1339 + $0x18] sm:$0xff]
    %v1344 = vld [vmem:[%s1339 + $0x20] sm:$0xff]
    %v1345 = vld [vmem:[%s1339 + $0x28] sm:$0xff]
    %v1346 = vld [vmem:[%s1339 + $0x30] sm:$0xff]
    %v1347 = vld [vmem:[%s1339 + $0x38] sm:$0xff]
    %v1348 = vld [vmem:[%s1339 + $0x40] sm:$0xff]
    %v1349 = vrot.slane %v1101, 2
    %v1350 = vrot.slane %v1102, 2
    %v1351 = vsel %vm668, %v1349, %v1350
    %v1352 = vrot.slane %v1103, 2
    %v1353 = vsel %vm668, %v1350, %v1352
    %v1354 = vrot.slane %v1104, 2
    %v1355 = vsel %vm668, %v1352, %v1354
    %v1356 = vrot.slane %v1105, 2
    %v1357 = vsel %vm668, %v1354, %v1356
    %v1358 = vsel %vm127, %v1351, 0
    %v1360 = vsel %vm127, %v1353, 0
    %v1362 = vsel %vm127, %v1355, 0
    %v1364 = vsel %vm127, %v1357, 0
    %v1366 = vsel %vm127, %v1356, 0
    %1368 = vmatprep.subr.mxu0 0.0
    %1369 = vmatpush1.msra.mxu0 %v1340
    %1370 = vmatprep.subr.mxu0 0.0
    %1371 = vmatpush1.msra.mxu0 %v1341
    %1372 = vmatprep.subr.mxu0 0.0
    %1373 = vmatpush1.msra.mxu0 %v1342
    %1374 = vmatprep.subr.mxu0 0.0
    %1375 = vmatpush1.msra.mxu0 %v1343
    %1376 = vmatprep.subr.mxu0 0.0
    %1377 = vmatpush1.msra.mxu0 %v1344
    %1378 = vmatprep.subr.mxu0 0.0
    %1379 = vmatpush1.msra.mxu0 %v1345
    %1380 = vmatprep.subr.mxu0 0.0
    %1381 = vmatpush1.msra.mxu0 %v1346
    %1382 = vmatprep.subr.mxu0 0.0
    %1383 = vmatpush1.msra.mxu0 %v1347
    %1384 = vmatprep.subr.mxu0 0.0
    %1385 = vmatpush1.msra.mxu0 %v1348
    %1386 = vmatprep.subr.mxu0 0.0
    %1387 = vmatpush1.msra.mxu0 0.0
    %1388 = vmatprep.subr.mxu0 0.0
    %1389 = vmatpush1.msra.mxu0 0.0
    %1390 = vmatprep.subr.mxu0 0.0
    %1391 = vmatpush1.msra.mxu0 0.0
    %1392 = vmatprep.subr.mxu0 0.0
    %1393 = vmatpush1.msra.mxu0 0.0
    %1394 = vmatprep.subr.mxu0 0.0
    %1395 = vmatpush1.msra.mxu0 0.0
    %1396 = vmatprep.subr.mxu0 0.0
    %1397 = vmatpush1.msra.mxu0 0.0
    %1398 = vmatprep.subr.mxu0 0.0
    %1399 = vmatpush1.msra.mxu0 0.0
    %1400 = vmatprep.subr.mxu0 0.0
    %1401 = vmatpush1.msra.mxu0 0.0
    %1402 = vmatprep.subr.mxu0 0.0
    %1403 = vmatpush1.msra.mxu0 0.0
    %1404 = vmatprep.subr.mxu0 0.0
    %1405 = vmatpush1.msra.mxu0 0.0
    %1406 = vmatprep.subr.mxu0 0.0
    %1407 = vmatpush1.msra.mxu0 0.0
    %1408 = vmatprep.subr.mxu0 0.0
    %1409 = vmatpush1.msra.mxu0 0.0
    %1410 = vmatprep.subr.mxu0 0.0
    %1411 = vmatpush1.msra.mxu0 0.0
    %1412 = vmatprep.subr.mxu0 0.0
    %1413 = vmatpush1.msra.mxu0 0.0
    %1414 = vmatprep.subr.mxu0 0.0
    %1415 = vmatpush1.msra.mxu0 0.0
    %1416 = vmatprep.subr.mxu0 0.0
    %1417 = vmatpush1.msra.mxu0 0.0
    %1418 = vmatprep.subr.mxu0 0.0
    %1419 = vmatpush1.msra.mxu0 0.0
    %1420 = vmatprep.subr.mxu0 0.0
    %1421 = vmatpush1.msra.mxu0 0.0
    %1422 = vmatprep.subr.mxu0 0.0
    %1423 = vmatpush1.msra.mxu0 0.0
    %1424 = vmatprep.subr.mxu0 0.0
    %1425 = vmatpush1.msra.mxu0 0.0
    %1426 = vmatprep.subr.mxu0 0.0
    %1427 = vmatpush1.msra.mxu0 0.0
    %1428 = vmatprep.subr.mxu0 0.0
    %1429 = vmatpush1.msra.mxu0 0.0
    %1430 = vmatprep.subr.mxu0 0.0
    %1431 = vmatpush1.msra.mxu0 0.0
    %1432 = vmatprep.mubr.f32.mxu0 0.0
    %1433 = vmatmul.mubr.f32.gmra.mrb[0].mxu0 %v1358
    %v1434 = vpop.f32.mrb[0].mxu0
    %v1435 = vadd.f32 0.0, %v1434
    %v1436 = vpop.f32.mrb[0].mxu0
    %1437 = vmatprep.mubr.f32.mxu0 0.0
    %1438 = vmatmul.mubr.f32.gmra.mrb[0].mxu0 %v1360
    %v1439 = vpop.f32.mrb[0].mxu0
    %v1440 = vadd.f32 0.0, %v1439
    %v1441 = vpop.f32.mrb[0].mxu0
    %1442 = vmatprep.mubr.f32.mxu0 0.0
    %1443 = vmatmul.mubr.f32.gmra.mrb[0].mxu0 %v1362
    %v1444 = vpop.f32.mrb[0].mxu0
    %v1445 = vadd.f32 0.0, %v1444
    %v1446 = vpop.f32.mrb[0].mxu0
    %1447 = vmatprep.mubr.f32.mxu0 0.0
    %1448 = vmatmul.mubr.f32.gmra.mrb[0].mxu0 %v1364
    %v1449 = vpop.f32.mrb[0].mxu0
    %v1450 = vadd.f32 0.0, %v1449
    %v1451 = vpop.f32.mrb[0].mxu0
    %1452 = vmatprep.mubr.f32.mxu0 0.0
    %1453 = vmatmul.mubr.f32.gmra.mrb[0].mxu0 %v1366
    %v1454 = vpop.f32.mrb[0].mxu0
    %v1455 = vadd.f32 0.0, %v1454
    %v1456 = vpop.f32.mrb[0].mxu0
    %1457 = vdwg.mxu0
    %v1458 = vadd.f32 %v1316, %v1435
    %v1459 = vadd.f32 %v1321, %v1440
    %v1460 = vadd.f32 %v1326, %v1445
    %v1461 = vadd.f32 %v1331, %v1450
    %v1462 = vadd.f32 %v1336, %v1455
    %v1468 = vrot.slane %v115, 2
    %v1469 = vrot.slane %v116, 2
    %v1470 = vsel %vm668, %v1468, %v1469
    %v1471 = vrot.slane %v117, 2
    %v1472 = vsel %vm668, %v1469, %v1471
    %v1473 = vrot.slane %v118, 2
    %v1474 = vsel %vm668, %v1471, %v1473
    %v1475 = vrot.slane %v119, 2
    %v1476 = vsel %vm668, %v1473, %v1475
    %v1482 = vadd.f32 %v1458, %v1470
    %v1483 = vadd.f32 %v1459, %v1472
    %v1484 = vadd.f32 %v1460, %v1474
    %v1485 = vadd.f32 %v1461, %v1476
    %v1486 = vadd.f32 %v1462, %v1475
    %1487 = vst.msk [vmem:[#allocation11] sm:$0xff] %vm127, %v1482
    %1488 = vst.msk [vmem:[#allocation11 + $0x8] sm:$0xff] %vm127, %v1483
    %1489 = vst.msk [vmem:[#allocation11 + $0x10] sm:$0xff] %vm127, %v1484
    %1490 = vst.msk [vmem:[#allocation11 + $0x18] sm:$0xff] %vm127, %v1485
    %vm1491 = vcmask 584704
    %1492 = vst.msk [vmem:[#allocation11 + $0x20] sm:$0xf] %vm1491, %v1486
    // Predicated region
    $region58: #{tpu_custom_call.1} parent=1 // pred_check
      _
    $region59: #{tpu_custom_call.1} parent=1 // pred_check_branch
      %1494 = sbr.rel (0) target = $region61
    $region60: #{tpu_custom_call.1} parent=1 // pred_region
      %s1496 = ssub.s32 640, 640
      %1497 = vsyncadd [#allocation4], %s1496
      %s1498 = sshll.u32 [#allocation11], 4
      %s1499 = int_to_ptr.vmem [resolvable:$true] %s1498
      %1504 = dma.vmem_to_hbm [thread:$0]  %s1499, 640, %s9, [#allocation4], 128, 128, 8
    $region61: #{tpu_custom_call.1} parent=1 // pred_fallthru
      _
    // Predicated region
    $region62: #{tpu_custom_call.1} parent=1 // pred_check
      _
    $region63: #{tpu_custom_call.1} parent=1 // pred_check_branch
      %1506 = sbr.rel (0) target = $region65
    $region64: #{tpu_custom_call.1} parent=1 // pred_region
      %1507 = dma.done [#allocation4], 640
    $region65: #{tpu_custom_call.1} parent=1 // pred_fallthru
      _
    %1508 = vsyncpa [#allocation3], 1
    %1509 = vsyncpa [#allocation6], 1
    %1510 = vsyncpa [#allocation9], 1
    %1511 = vsyncpa [#allocation4], 1

</llo_original>
